<compile_context>
chip_gen: v7x
topology: tpu7x:2x2x1
jax: 0.10.0
libtpu: 0.0.40
codegen_flags: <defaults>
</compile_context>

<pallas_src>
import functools

import jax
import jax.numpy as jnp
import numpy as np
from jax.experimental import pallas as pl
from jax.experimental.pallas import tpu as pltpu


def _round_up(v, m):
    return ((v + m - 1) // m) * m


def _hmcnf_kernel(
    # inputs
    x_ref,                 # (TB, input_dim)  bf16
    g1w, g1b,              # (in, Hp) bf16, (1, Hp) f32
    g2w, g2b,              # (Hp, Hp) bf16, (1, Hp) f32
    grw, grb,              # fused residuals: (in, 4Hp) bf16, (1, 4Hp) f32
    gow, gob,              # (Hp, Cp) bf16, (1, Cp) f32
    lfw, lfb,              # stacked l{i}fc:  (5, Hp, Hp) bf16, (5, 1, Hp) f32
    low, lob,              # stacked l{i}out: (5, Hp, Cp) bf16 (cols at offsets), (1, Cp) f32
    # outputs
    gp_ref, lp_ref,        # (TB, Cp) f32 each
    *, hidden_pad,
):
    Hp = hidden_pad
    x = x_ref[...]                                   # already bf16 (no cast pass)

    def mm(a, w):
        # bf16 MXU operands, f32 accumulation.
        return jnp.dot(a.astype(w.dtype), w, preferred_element_type=jnp.float32)

    def relu(t):
        return jnp.maximum(t, 0.0)

    def sigmoid(t):
        # exp on the EUP; exact divide (calibrated probabilities).
        return 1.0 / (1.0 + jnp.exp(-t))

    # ---- global (shared) path ----
    # One lane-dense fused residual matmul instead of four narrow ones.
    r = mm(x, grw[...]) + grb[...]                   # (TB, 4Hp) f32

    g2w_v = g2w[...]
    g2b_v = g2b[...]
    gA1 = relu(mm(x, g1w[...]) + g1b[...])
    gA2 = relu(mm(gA1, g2w_v) + g2b_v + r[:, 0 * Hp:1 * Hp])
    gA3 = relu(mm(gA2, g2w_v) + g2b_v + r[:, 1 * Hp:2 * Hp])   # g2fc reused (as in reference)
    gA4 = relu(mm(gA3, g2w_v) + g2b_v + r[:, 2 * Hp:3 * Hp])
    gA5 = relu(mm(gA4, g2w_v) + g2b_v + r[:, 3 * Hp:4 * Hp])

    # dropout: identity (inference)
    gp = sigmoid(mm(gA5, gow[...]) + gob[...])       # (TB, Cp)

    # ---- local (per-level) towers: per-level matmuls, no block-diag densification ----
    # Each level's l{i}out weight is pre-placed at its class-column offset inside
    # (Hp, Cp), so the five projections accumulate into one lane-dense logit slab.
    gAs = (gA1, gA2, gA3, gA4, gA5)
    logits = None
    for k in range(5):                               # static unroll (5 levels)
        h_k = relu(mm(gAs[k], lfw[k]) + lfb[k])      # (TB, Hp)
        contrib = mm(h_k, low[k])                    # (TB, Cp)
        logits = contrib if logits is None else logits + contrib
    lp = sigmoid(logits + lob[...])                  # (TB, Cp) == concat(lP1..lP5) padded

    # Full-width, 128-aligned stores only.
    gp_ref[...] = gp.astype(gp_ref.dtype)
    lp_ref[...] = lp.astype(lp_ref.dtype)


def _resident_spec(shape):
    nd = len(shape)
    # Constant index_map: block never changes across the grid -> single buffer.
    return pl.BlockSpec(shape, lambda i, _nd=nd: (0,) * _nd,
                        pipeline_mode=pl.Buffered(1))


def _pack_params(params, num_classes_list, hidden_dim, hidden_pad,
                 total_classes, classes_pad, mm_dtype):
    """Fuse / pad / stack weights on the host; cast matmul operands to bf16."""
    H, Hp, Cp = hidden_dim, hidden_pad, classes_pad
    f32 = jnp.float32

    def pad_w(w, rows, cols):
        w = w.astype(f32)
        return jnp.pad(w, ((0, rows - w.shape[0]), (0, cols - w.shape[1])))

    g1w, g1b = params["g1fc"]
    g2w, g2b = params["g2fc"]
    gow, gob = params["gout"]
    in_dim = g1w.shape[0]

    g1w_p = pad_w(g1w, in_dim, Hp)
    g1b_p = pad_w(g1b, 1, Hp)
    g2w_p = pad_w(g2w, Hp, Hp)
    g2b_p = pad_w(g2b, 1, Hp)
    gow_p = pad_w(gow, Hp, Cp)
    gob_p = pad_w(gob, 1, Cp)

    # Residual projections fused along the output (lane) axis, per-slice padded to Hp.
    grw_p = jnp.concatenate(
        [pad_w(params[f"g{i}fc_rs"][0], in_dim, Hp) for i in (2, 3, 4, 5)], axis=1)
    grb_p = jnp.concatenate(
        [pad_w(params[f"g{i}fc_rs"][1], 1, Hp) for i in (2, 3, 4, 5)], axis=1)

    # Stacked (not block-diagonal) local-tower weights.
    lfw_p = jnp.stack([pad_w(params[f"l{i}fc"][0], Hp, Hp) for i in range(1, 6)])   # (5,Hp,Hp)
    lfb_p = jnp.stack([pad_w(params[f"l{i}fc"][1], 1, Hp) for i in range(1, 6)])    # (5,1,Hp)

    low_p = jnp.zeros((5, Hp, Cp), f32)
    lob_p = jnp.zeros((1, Cp), f32)
    col = 0
    for idx, nc in enumerate(num_classes_list):
        wo, bo = params[f"l{idx + 1}out"]
        low_p = low_p.at[idx, :H, col:col + nc].set(wo.astype(f32))
        lob_p = lob_p.at[:, col:col + nc].set(bo.astype(f32))
        col += nc

    cast = lambda w: w.astype(mm_dtype)
    return [
        cast(g1w_p), g1b_p,
        cast(g2w_p), g2b_p,
        cast(grw_p), grb_p,
        cast(gow_p), gob_p,
        cast(lfw_p), lfb_p,
        cast(low_p), lob_p,
    ]


def hmcnf_forward(x, params, num_classes_list, total_classes, beta=0.5,
                  block_batch=512, mm_dtype=jnp.bfloat16):
    B, input_dim = x.shape
    H = params["g1fc"][0].shape[1]
    Hp = _round_up(H, 128)
    Cp = _round_up(total_classes, 128)
    class_sizes = tuple(int(n) for n in num_classes_list)
    assert sum(class_sizes) == total_classes
    class_offsets = tuple(int(o) for o in np.cumsum([0] + list(class_sizes))[:-1])

    # Batch tile: multiple of 16 (bf16 sublane packing); split so grid >= 2 whenever
    # the batch allows, so the "parallel" axis shards across both v7x TensorCores.
    TB = min(int(block_batch), B)
    if TB >= B and B > 16:
        TB = -(-B // 2)
    TB = max(16, _round_up(TB, 16))
    grid_b = pl.cdiv(B, TB)
    B_pad = grid_b * TB

    x_p = x.astype(mm_dtype)                 # ship x already in bf16
    if B_pad != B:
        x_p = jnp.pad(x_p, ((0, B_pad - B), (0, 0)))

    weights = _pack_params(params, class_sizes, H, Hp, total_classes, Cp, mm_dtype)

    kernel = functools.partial(_hmcnf_kernel, hidden_pad=Hp)

    out_shape = (
        jax.ShapeDtypeStruct((B_pad, Cp), jnp.float32),   # gP (padded)
        jax.ShapeDtypeStruct((B_pad, Cp), jnp.float32),   # lP (padded)
    )

    in_specs = [pl.BlockSpec((TB, input_dim), lambda i: (i, 0))]
    in_specs += [_resident_spec(tuple(w.shape)) for w in weights]   # resident, single-buffered

    out_specs = (
        pl.BlockSpec((TB, Cp), lambda i: (i, 0)),
        pl.BlockSpec((TB, Cp), lambda i: (i, 0)),
    )

    # Explicit scoped-VMEM budget: single-buffered weights + double-buffered x /
    # outputs + rough live-intermediate estimate, with headroom.
    weight_bytes = sum(int(np.prod(w.shape)) * int(np.dtype(w.dtype).itemsize)
                       for w in weights)
    io_bytes = 2 * TB * input_dim * int(np.dtype(mm_dtype).itemsize)   # x, 2 buffers
    io_bytes += 2 * 2 * TB * Cp * 4                                    # 2 outputs, 2 buffers
    act_bytes = TB * (12 * Hp + 3 * Cp) * 4
    vmem_limit = int(1.5 * (weight_bytes + io_bytes + act_bytes)) + (4 << 20)
    vmem_limit = min(128 << 20, max(32 << 20, vmem_limit))

    gP_pad, lP_pad = pl.pallas_call(
        kernel,
        out_shape=out_shape,
        grid=(grid_b,),
        in_specs=in_specs,
        out_specs=out_specs,
        compiler_params=pltpu.CompilerParams(
            dimension_semantics=("parallel",),
            vmem_limit_bytes=vmem_limit,
        ),
    )(x_p, *weights)

    # Un-pad and blend in the wrapper (one less kernel output slab).
    gP = gP_pad[:B, :total_classes]
    lP = lP_pad[:B, :total_classes]
    output = beta * lP + (1.0 - beta) * gP
    lPs = tuple(lP[:, off:off + sz] for off, sz in zip(class_offsets, class_sizes))
    return output, gP, lPs


def _init_linear(key, in_dim, out_dim):
    kw, kb = jax.random.split(key)
    w = jax.random.normal(kw, (in_dim, out_dim), jnp.float32) * 0.1
    b = jax.random.normal(kb, (1, out_dim), jnp.float32) * 0.1
    return w, b


def _reference_forward(x, params, num_classes_list, beta):
    # Pure-JAX f32 reference mirroring the PyTorch forward (eval mode).
    def lin(v, name):
        w, b = params[name]
        return v @ w + b

    relu = lambda t: jnp.maximum(t, 0.0)
    sig = jax.nn.sigmoid

    gA1 = relu(lin(x, "g1fc"))
    gA2 = relu(lin(gA1, "g2fc") + lin(x, "g2fc_rs"))
    gA3 = relu(lin(gA2, "g2fc") + lin(x, "g3fc_rs"))
    gA4 = relu(lin(gA3, "g2fc") + lin(x, "g4fc_rs"))
    gA5 = relu(lin(gA4, "g2fc") + lin(x, "g5fc_rs"))
    gP = sig(lin(gA5, "gout"))
    lP1 = sig(lin(relu(lin(gA1, "l1fc")), "l1out"))
    lP2 = sig(lin(relu(lin(gA2, "l2fc")), "l2out"))
    lP3 = sig(lin(relu(lin(gA3, "l3fc")), "l3out"))
    lP4 = sig(lin(relu(lin(gA4, "l4fc")), "l4out"))
    lP5 = sig(lin(relu(lin(gA5, "l5fc")), "l5out"))
    lP = jnp.concatenate((lP1, lP2, lP3, lP4, lP5), axis=-1)
    out = beta * lP + (1.0 - beta) * gP
    return out, gP, (lP1, lP2, lP3, lP4, lP5)


if __name__ == "__main__":
    # Small, deterministic configuration.
    num_classes_list = [4, 3, 3, 2, 4]
    total_classes = sum(num_classes_list)        # 16  (padded to 128 internally)
    input_dim = 32
    hidden_dim = 32                              # padded to 128 internally
    batch = 24                                   # -> TB=16, grid=(2,), batch padded to 32
    beta = 0.5

    key = jax.random.PRNGKey(0)
    keys = jax.random.split(key, 32)
    ki = iter(range(32))

    params = {}
    params["g1fc"] = _init_linear(keys[next(ki)], input_dim, hidden_dim)
    params["g2fc"] = _init_linear(keys[next(ki)], hidden_dim, hidden_dim)
    params["g2fc_rs"] = _init_linear(keys[next(ki)], input_dim, hidden_dim)
    params["g3fc_rs"] = _init_linear(keys[next(ki)], input_dim, hidden_dim)
    params["g4fc_rs"] = _init_linear(keys[next(ki)], input_dim, hidden_dim)
    params["g5fc_rs"] = _init_linear(keys[next(ki)], input_dim, hidden_dim)
    params["gout"] = _init_linear(keys[next(ki)], hidden_dim, total_classes)
    for lvl, nc in enumerate(num_classes_list, start=1):
        params[f"l{lvl}fc"] = _init_linear(keys[next(ki)], hidden_dim, hidden_dim)
        params[f"l{lvl}out"] = _init_linear(keys[next(ki)], hidden_dim, nc)

    x = jax.random.normal(keys[next(ki)], (batch, input_dim), jnp.float32)

    output, gP, lPs = jax.block_until_ready(
        hmcnf_forward(x, params, num_classes_list, total_classes, beta=beta)
    )

    # Correctness check against the pure-JAX f32 reference (tolerance for bf16
    # matmul operands; sigmoid is exact).
    ref_out, ref_gP, ref_lPs = _reference_forward(x, params, num_classes_list, beta)
    np.testing.assert_allclose(np.asarray(output), np.asarray(ref_out), rtol=2e-2, atol=2e-2)
    np.testing.assert_allclose(np.asarray(gP), np.asarray(ref_gP), rtol=2e-2, atol=2e-2)
    for got, want in zip(lPs, ref_lPs):
        np.testing.assert_allclose(np.asarray(got), np.asarray(want), rtol=2e-2, atol=2e-2)

    print("KERNEL_OK")
</pallas_src>

<mosaic_0001>
module attributes {stable_mosaic.version = 11 : i64} {
  func.func @_hmcnf_kernel(%arg0: i32, %arg1: memref<16x32xbf16, #tpu.memory_space<vmem>>, %arg2: memref<32x128xbf16, #tpu.memory_space<vmem>>, %arg3: memref<1x128xf32, #tpu.memory_space<vmem>>, %arg4: memref<128x128xbf16, #tpu.memory_space<vmem>>, %arg5: memref<1x128xf32, #tpu.memory_space<vmem>>, %arg6: memref<32x512xbf16, #tpu.memory_space<vmem>>, %arg7: memref<1x512xf32, #tpu.memory_space<vmem>>, %arg8: memref<128x128xbf16, #tpu.memory_space<vmem>>, %arg9: memref<1x128xf32, #tpu.memory_space<vmem>>, %arg10: memref<5x128x128xbf16, #tpu.memory_space<vmem>>, %arg11: memref<5x1x128xf32, #tpu.memory_space<vmem>>, %arg12: memref<5x128x128xbf16, #tpu.memory_space<vmem>>, %arg13: memref<1x128xf32, #tpu.memory_space<vmem>>, %arg14: memref<16x128xf32, #tpu.memory_space<vmem>>, %arg15: memref<16x128xf32, #tpu.memory_space<vmem>>) attributes {dimension_semantics = [#tpu.dimension_semantics<parallel>], iteration_bounds = array<i64: 2>, scalar_prefetch = 0 : i64, scratch_operands = 0 : i64, tpu.core_type = #tpu.core_type<tc>, window_params = [{transform_indices = @transform_0, window_bounds = array<i64: 16, 32>}, {pipeline_mode = #tpu.pipeline_mode<synchronous>, transform_indices = @transform_1, window_bounds = array<i64: 32, 128>}, {pipeline_mode = #tpu.pipeline_mode<synchronous>, transform_indices = @transform_2, window_bounds = array<i64: 1, 128>}, {pipeline_mode = #tpu.pipeline_mode<synchronous>, transform_indices = @transform_3, window_bounds = array<i64: 128, 128>}, {pipeline_mode = #tpu.pipeline_mode<synchronous>, transform_indices = @transform_4, window_bounds = array<i64: 1, 128>}, {pipeline_mode = #tpu.pipeline_mode<synchronous>, transform_indices = @transform_5, window_bounds = array<i64: 32, 512>}, {pipeline_mode = #tpu.pipeline_mode<synchronous>, transform_indices = @transform_6, window_bounds = array<i64: 1, 512>}, {pipeline_mode = #tpu.pipeline_mode<synchronous>, transform_indices = @transform_7, window_bounds = array<i64: 128, 128>}, {pipeline_mode = #tpu.pipeline_mode<synchronous>, transform_indices = @transform_8, window_bounds = array<i64: 1, 128>}, {pipeline_mode = #tpu.pipeline_mode<synchronous>, transform_indices = @transform_9, window_bounds = array<i64: 5, 128, 128>}, {pipeline_mode = #tpu.pipeline_mode<synchronous>, transform_indices = @transform_10, window_bounds = array<i64: 5, 1, 128>}, {pipeline_mode = #tpu.pipeline_mode<synchronous>, transform_indices = @transform_11, window_bounds = array<i64: 5, 128, 128>}, {pipeline_mode = #tpu.pipeline_mode<synchronous>, transform_indices = @transform_12, window_bounds = array<i64: 1, 128>}, {transform_indices = @transform_13, window_bounds = array<i64: 16, 128>}, {transform_indices = @transform_14, window_bounds = array<i64: 16, 128>}]} {
    %c0 = arith.constant 0 : index
    %c0_0 = arith.constant 0 : index
    %0 = vector.load %arg1[%c0, %c0_0] : memref<16x32xbf16, #tpu.memory_space<vmem>>, vector<16x32xbf16>
    %c0_1 = arith.constant 0 : index
    %c0_2 = arith.constant 0 : index
    %1 = vector.load %arg6[%c0_1, %c0_2] : memref<32x512xbf16, #tpu.memory_space<vmem>>, vector<32x512xbf16>
    %cst = arith.constant dense<0.000000e+00> : vector<16x512xf32>
    %2 = tpu.matmul %0, %1, %cst {dimension_numbers = #tpu.dot_dimension_numbers<[1], [0], [0], [1], [0, 0, 1, 1], [], []>} : vector<16x32xbf16>, vector<32x512xbf16>, vector<16x512xf32> -> vector<16x512xf32>
    %c0_3 = arith.constant 0 : index
    %c0_4 = arith.constant 0 : index
    %3 = vector.load %arg7[%c0_3, %c0_4] : memref<1x512xf32, #tpu.memory_space<vmem>>, vector<1x512xf32>
    %4 = vector.broadcast %3 : vector<1x512xf32> to vector<16x512xf32>
    %5 = arith.addf %2, %4 : vector<16x512xf32>
    %c0_5 = arith.constant 0 : index
    %c0_6 = arith.constant 0 : index
    %6 = vector.load %arg4[%c0_5, %c0_6] : memref<128x128xbf16, #tpu.memory_space<vmem>>, vector<128x128xbf16>
    %c0_7 = arith.constant 0 : index
    %c0_8 = arith.constant 0 : index
    %7 = vector.load %arg5[%c0_7, %c0_8] : memref<1x128xf32, #tpu.memory_space<vmem>>, vector<1x128xf32>
    %c0_9 = arith.constant 0 : index
    %c0_10 = arith.constant 0 : index
    %8 = vector.load %arg2[%c0_9, %c0_10] : memref<32x128xbf16, #tpu.memory_space<vmem>>, vector<32x128xbf16>
    %cst_11 = arith.constant dense<0.000000e+00> : vector<16x128xf32>
    %9 = tpu.matmul %0, %8, %cst_11 {dimension_numbers = #tpu.dot_dimension_numbers<[1], [0], [0], [1], [0, 0, 1, 1], [], []>} : vector<16x32xbf16>, vector<32x128xbf16>, vector<16x128xf32> -> vector<16x128xf32>
    %c0_12 = arith.constant 0 : index
    %c0_13 = arith.constant 0 : index
    %10 = vector.load %arg3[%c0_12, %c0_13] : memref<1x128xf32, #tpu.memory_space<vmem>>, vector<1x128xf32>
    %11 = vector.broadcast %10 : vector<1x128xf32> to vector<16x128xf32>
    %12 = arith.addf %9, %11 : vector<16x128xf32>
    %cst_14 = arith.constant 0.000000e+00 : f32
    %13 = vector.broadcast %cst_14 : f32 to vector<16x128xf32>
    %14 = arith.maximumf %12, %13 : vector<16x128xf32>
    %15 = arith.truncf %14 : vector<16x128xf32> to vector<16x128xbf16>
    %cst_15 = arith.constant dense<0.000000e+00> : vector<16x128xf32>
    %16 = tpu.matmul %15, %6, %cst_15 {dimension_numbers = #tpu.dot_dimension_numbers<[1], [0], [0], [1], [0, 0, 1, 1], [], []>} : vector<16x128xbf16>, vector<128x128xbf16>, vector<16x128xf32> -> vector<16x128xf32>
    %17 = vector.broadcast %7 : vector<1x128xf32> to vector<16x128xf32>
    %18 = arith.addf %16, %17 : vector<16x128xf32>
    %19 = vector.extract_strided_slice %5 {offsets = [0, 0], sizes = [16, 128], strides = [1, 1]} : vector<16x512xf32> to vector<16x128xf32>
    %20 = arith.addf %18, %19 : vector<16x128xf32>
    %cst_16 = arith.constant 0.000000e+00 : f32
    %21 = vector.broadcast %cst_16 : f32 to vector<16x128xf32>
    %22 = arith.maximumf %20, %21 : vector<16x128xf32>
    %23 = arith.truncf %22 : vector<16x128xf32> to vector<16x128xbf16>
    %cst_17 = arith.constant dense<0.000000e+00> : vector<16x128xf32>
    %24 = tpu.matmul %23, %6, %cst_17 {dimension_numbers = #tpu.dot_dimension_numbers<[1], [0], [0], [1], [0, 0, 1, 1], [], []>} : vector<16x128xbf16>, vector<128x128xbf16>, vector<16x128xf32> -> vector<16x128xf32>
    %25 = vector.broadcast %7 : vector<1x128xf32> to vector<16x128xf32>
    %26 = arith.addf %24, %25 : vector<16x128xf32>
    %27 = vector.extract_strided_slice %5 {offsets = [0, 128], sizes = [16, 128], strides = [1, 1]} : vector<16x512xf32> to vector<16x128xf32>
    %28 = arith.addf %26, %27 : vector<16x128xf32>
    %cst_18 = arith.constant 0.000000e+00 : f32
    %29 = vector.broadcast %cst_18 : f32 to vector<16x128xf32>
    %30 = arith.maximumf %28, %29 : vector<16x128xf32>
    %31 = arith.truncf %30 : vector<16x128xf32> to vector<16x128xbf16>
    %cst_19 = arith.constant dense<0.000000e+00> : vector<16x128xf32>
    %32 = tpu.matmul %31, %6, %cst_19 {dimension_numbers = #tpu.dot_dimension_numbers<[1], [0], [0], [1], [0, 0, 1, 1], [], []>} : vector<16x128xbf16>, vector<128x128xbf16>, vector<16x128xf32> -> vector<16x128xf32>
    %33 = vector.broadcast %7 : vector<1x128xf32> to vector<16x128xf32>
    %34 = arith.addf %32, %33 : vector<16x128xf32>
    %35 = vector.extract_strided_slice %5 {offsets = [0, 256], sizes = [16, 128], strides = [1, 1]} : vector<16x512xf32> to vector<16x128xf32>
    %36 = arith.addf %34, %35 : vector<16x128xf32>
    %cst_20 = arith.constant 0.000000e+00 : f32
    %37 = vector.broadcast %cst_20 : f32 to vector<16x128xf32>
    %38 = arith.maximumf %36, %37 : vector<16x128xf32>
    %39 = arith.truncf %38 : vector<16x128xf32> to vector<16x128xbf16>
    %cst_21 = arith.constant dense<0.000000e+00> : vector<16x128xf32>
    %40 = tpu.matmul %39, %6, %cst_21 {dimension_numbers = #tpu.dot_dimension_numbers<[1], [0], [0], [1], [0, 0, 1, 1], [], []>} : vector<16x128xbf16>, vector<128x128xbf16>, vector<16x128xf32> -> vector<16x128xf32>
    %41 = vector.broadcast %7 : vector<1x128xf32> to vector<16x128xf32>
    %42 = arith.addf %40, %41 : vector<16x128xf32>
    %43 = vector.extract_strided_slice %5 {offsets = [0, 384], sizes = [16, 128], strides = [1, 1]} : vector<16x512xf32> to vector<16x128xf32>
    %44 = arith.addf %42, %43 : vector<16x128xf32>
    %cst_22 = arith.constant 0.000000e+00 : f32
    %45 = vector.broadcast %cst_22 : f32 to vector<16x128xf32>
    %46 = arith.maximumf %44, %45 : vector<16x128xf32>
    %c0_23 = arith.constant 0 : index
    %c0_24 = arith.constant 0 : index
    %47 = vector.load %arg8[%c0_23, %c0_24] : memref<128x128xbf16, #tpu.memory_space<vmem>>, vector<128x128xbf16>
    %48 = arith.truncf %46 : vector<16x128xf32> to vector<16x128xbf16>
    %cst_25 = arith.constant dense<0.000000e+00> : vector<16x128xf32>
    %49 = tpu.matmul %48, %47, %cst_25 {dimension_numbers = #tpu.dot_dimension_numbers<[1], [0], [0], [1], [0, 0, 1, 1], [], []>} : vector<16x128xbf16>, vector<128x128xbf16>, vector<16x128xf32> -> vector<16x128xf32>
    %c0_26 = arith.constant 0 : index
    %c0_27 = arith.constant 0 : index
    %50 = vector.load %arg9[%c0_26, %c0_27] : memref<1x128xf32, #tpu.memory_space<vmem>>, vector<1x128xf32>
    %51 = vector.broadcast %50 : vector<1x128xf32> to vector<16x128xf32>
    %52 = arith.addf %49, %51 : vector<16x128xf32>
    %cst_28 = arith.constant 0.000000e+00 : f32
    %53 = vector.broadcast %cst_28 : f32 to vector<16x128xf32>
    %54 = arith.subf %53, %52 : vector<16x128xf32>
    %55 = math.exp %54 : vector<16x128xf32>
    %cst_29 = arith.constant 1.000000e+00 : f32
    %56 = vector.broadcast %cst_29 : f32 to vector<16x128xf32>
    %57 = arith.addf %56, %55 : vector<16x128xf32>
    %cst_30 = arith.constant 1.000000e+00 : f32
    %58 = vector.broadcast %cst_30 : f32 to vector<16x128xf32>
    %59 = arith.divf %58, %57 : vector<16x128xf32>
    %c0_31 = arith.constant 0 : index
    %c0_32 = arith.constant 0 : index
    %c0_33 = arith.constant 0 : index
    %60 = vector.load %arg10[%c0_31, %c0_32, %c0_33] : memref<5x128x128xbf16, #tpu.memory_space<vmem>>, vector<1x128x128xbf16>
    %61 = vector.shape_cast %60 : vector<1x128x128xbf16> to vector<128x128xbf16>
    %62 = arith.truncf %14 : vector<16x128xf32> to vector<16x128xbf16>
    %cst_34 = arith.constant dense<0.000000e+00> : vector<16x128xf32>
    %63 = tpu.matmul %62, %61, %cst_34 {dimension_numbers = #tpu.dot_dimension_numbers<[1], [0], [0], [1], [0, 0, 1, 1], [], []>} : vector<16x128xbf16>, vector<128x128xbf16>, vector<16x128xf32> -> vector<16x128xf32>
    %c0_35 = arith.constant 0 : index
    %c0_36 = arith.constant 0 : index
    %c0_37 = arith.constant 0 : index
    %64 = vector.load %arg11[%c0_35, %c0_36, %c0_37] : memref<5x1x128xf32, #tpu.memory_space<vmem>>, vector<1x1x128xf32>
    %65 = vector.shape_cast %64 : vector<1x1x128xf32> to vector<1x128xf32>
    %66 = vector.broadcast %65 : vector<1x128xf32> to vector<16x128xf32>
    %67 = arith.addf %63, %66 : vector<16x128xf32>
    %cst_38 = arith.constant 0.000000e+00 : f32
    %68 = vector.broadcast %cst_38 : f32 to vector<16x128xf32>
    %69 = arith.maximumf %67, %68 : vector<16x128xf32>
    %c0_39 = arith.constant 0 : index
    %c0_40 = arith.constant 0 : index
    %c0_41 = arith.constant 0 : index
    %70 = vector.load %arg12[%c0_39, %c0_40, %c0_41] : memref<5x128x128xbf16, #tpu.memory_space<vmem>>, vector<1x128x128xbf16>
    %71 = vector.shape_cast %70 : vector<1x128x128xbf16> to vector<128x128xbf16>
    %72 = arith.truncf %69 : vector<16x128xf32> to vector<16x128xbf16>
    %cst_42 = arith.constant dense<0.000000e+00> : vector<16x128xf32>
    %73 = tpu.matmul %72, %71, %cst_42 {dimension_numbers = #tpu.dot_dimension_numbers<[1], [0], [0], [1], [0, 0, 1, 1], [], []>} : vector<16x128xbf16>, vector<128x128xbf16>, vector<16x128xf32> -> vector<16x128xf32>
    %c1 = arith.constant 1 : index
    %c0_43 = arith.constant 0 : index
    %c0_44 = arith.constant 0 : index
    %74 = vector.load %arg10[%c1, %c0_43, %c0_44] : memref<5x128x128xbf16, #tpu.memory_space<vmem>>, vector<1x128x128xbf16>
    %75 = vector.shape_cast %74 : vector<1x128x128xbf16> to vector<128x128xbf16>
    %76 = arith.truncf %22 : vector<16x128xf32> to vector<16x128xbf16>
    %cst_45 = arith.constant dense<0.000000e+00> : vector<16x128xf32>
    %77 = tpu.matmul %76, %75, %cst_45 {dimension_numbers = #tpu.dot_dimension_numbers<[1], [0], [0], [1], [0, 0, 1, 1], [], []>} : vector<16x128xbf16>, vector<128x128xbf16>, vector<16x128xf32> -> vector<16x128xf32>
    %c1_46 = arith.constant 1 : index
    %c0_47 = arith.constant 0 : index
    %c0_48 = arith.constant 0 : index
    %78 = vector.load %arg11[%c1_46, %c0_47, %c0_48] : memref<5x1x128xf32, #tpu.memory_space<vmem>>, vector<1x1x128xf32>
    %79 = vector.shape_cast %78 : vector<1x1x128xf32> to vector<1x128xf32>
    %80 = vector.broadcast %79 : vector<1x128xf32> to vector<16x128xf32>
    %81 = arith.addf %77, %80 : vector<16x128xf32>
    %cst_49 = arith.constant 0.000000e+00 : f32
    %82 = vector.broadcast %cst_49 : f32 to vector<16x128xf32>
    %83 = arith.maximumf %81, %82 : vector<16x128xf32>
    %c1_50 = arith.constant 1 : index
    %c0_51 = arith.constant 0 : index
    %c0_52 = arith.constant 0 : index
    %84 = vector.load %arg12[%c1_50, %c0_51, %c0_52] : memref<5x128x128xbf16, #tpu.memory_space<vmem>>, vector<1x128x128xbf16>
    %85 = vector.shape_cast %84 : vector<1x128x128xbf16> to vector<128x128xbf16>
    %86 = arith.truncf %83 : vector<16x128xf32> to vector<16x128xbf16>
    %cst_53 = arith.constant dense<0.000000e+00> : vector<16x128xf32>
    %87 = tpu.matmul %86, %85, %cst_53 {dimension_numbers = #tpu.dot_dimension_numbers<[1], [0], [0], [1], [0, 0, 1, 1], [], []>} : vector<16x128xbf16>, vector<128x128xbf16>, vector<16x128xf32> -> vector<16x128xf32>
    %88 = arith.addf %73, %87 : vector<16x128xf32>
    %c2 = arith.constant 2 : index
    %c0_54 = arith.constant 0 : index
    %c0_55 = arith.constant 0 : index
    %89 = vector.load %arg10[%c2, %c0_54, %c0_55] : memref<5x128x128xbf16, #tpu.memory_space<vmem>>, vector<1x128x128xbf16>
    %90 = vector.shape_cast %89 : vector<1x128x128xbf16> to vector<128x128xbf16>
    %91 = arith.truncf %30 : vector<16x128xf32> to vector<16x128xbf16>
    %cst_56 = arith.constant dense<0.000000e+00> : vector<16x128xf32>
    %92 = tpu.matmul %91, %90, %cst_56 {dimension_numbers = #tpu.dot_dimension_numbers<[1], [0], [0], [1], [0, 0, 1, 1], [], []>} : vector<16x128xbf16>, vector<128x128xbf16>, vector<16x128xf32> -> vector<16x128xf32>
    %c2_57 = arith.constant 2 : index
    %c0_58 = arith.constant 0 : index
    %c0_59 = arith.constant 0 : index
    %93 = vector.load %arg11[%c2_57, %c0_58, %c0_59] : memref<5x1x128xf32, #tpu.memory_space<vmem>>, vector<1x1x128xf32>
    %94 = vector.shape_cast %93 : vector<1x1x128xf32> to vector<1x128xf32>
    %95 = vector.broadcast %94 : vector<1x128xf32> to vector<16x128xf32>
    %96 = arith.addf %92, %95 : vector<16x128xf32>
    %cst_60 = arith.constant 0.000000e+00 : f32
    %97 = vector.broadcast %cst_60 : f32 to vector<16x128xf32>
    %98 = arith.maximumf %96, %97 : vector<16x128xf32>
    %c2_61 = arith.constant 2 : index
    %c0_62 = arith.constant 0 : index
    %c0_63 = arith.constant 0 : index
    %99 = vector.load %arg12[%c2_61, %c0_62, %c0_63] : memref<5x128x128xbf16, #tpu.memory_space<vmem>>, vector<1x128x128xbf16>
    %100 = vector.shape_cast %99 : vector<1x128x128xbf16> to vector<128x128xbf16>
    %101 = arith.truncf %98 : vector<16x128xf32> to vector<16x128xbf16>
    %cst_64 = arith.constant dense<0.000000e+00> : vector<16x128xf32>
    %102 = tpu.matmul %101, %100, %cst_64 {dimension_numbers = #tpu.dot_dimension_numbers<[1], [0], [0], [1], [0, 0, 1, 1], [], []>} : vector<16x128xbf16>, vector<128x128xbf16>, vector<16x128xf32> -> vector<16x128xf32>
    %103 = arith.addf %88, %102 : vector<16x128xf32>
    %c3 = arith.constant 3 : index
    %c0_65 = arith.constant 0 : index
    %c0_66 = arith.constant 0 : index
    %104 = vector.load %arg10[%c3, %c0_65, %c0_66] : memref<5x128x128xbf16, #tpu.memory_space<vmem>>, vector<1x128x128xbf16>
    %105 = vector.shape_cast %104 : vector<1x128x128xbf16> to vector<128x128xbf16>
    %106 = arith.truncf %38 : vector<16x128xf32> to vector<16x128xbf16>
    %cst_67 = arith.constant dense<0.000000e+00> : vector<16x128xf32>
    %107 = tpu.matmul %106, %105, %cst_67 {dimension_numbers = #tpu.dot_dimension_numbers<[1], [0], [0], [1], [0, 0, 1, 1], [], []>} : vector<16x128xbf16>, vector<128x128xbf16>, vector<16x128xf32> -> vector<16x128xf32>
    %c3_68 = arith.constant 3 : index
    %c0_69 = arith.constant 0 : index
    %c0_70 = arith.constant 0 : index
    %108 = vector.load %arg11[%c3_68, %c0_69, %c0_70] : memref<5x1x128xf32, #tpu.memory_space<vmem>>, vector<1x1x128xf32>
    %109 = vector.shape_cast %108 : vector<1x1x128xf32> to vector<1x128xf32>
    %110 = vector.broadcast %109 : vector<1x128xf32> to vector<16x128xf32>
    %111 = arith.addf %107, %110 : vector<16x128xf32>
    %cst_71 = arith.constant 0.000000e+00 : f32
    %112 = vector.broadcast %cst_71 : f32 to vector<16x128xf32>
    %113 = arith.maximumf %111, %112 : vector<16x128xf32>
    %c3_72 = arith.constant 3 : index
    %c0_73 = arith.constant 0 : index
    %c0_74 = arith.constant 0 : index
    %114 = vector.load %arg12[%c3_72, %c0_73, %c0_74] : memref<5x128x128xbf16, #tpu.memory_space<vmem>>, vector<1x128x128xbf16>
    %115 = vector.shape_cast %114 : vector<1x128x128xbf16> to vector<128x128xbf16>
    %116 = arith.truncf %113 : vector<16x128xf32> to vector<16x128xbf16>
    %cst_75 = arith.constant dense<0.000000e+00> : vector<16x128xf32>
    %117 = tpu.matmul %116, %115, %cst_75 {dimension_numbers = #tpu.dot_dimension_numbers<[1], [0], [0], [1], [0, 0, 1, 1], [], []>} : vector<16x128xbf16>, vector<128x128xbf16>, vector<16x128xf32> -> vector<16x128xf32>
    %118 = arith.addf %103, %117 : vector<16x128xf32>
    %c4 = arith.constant 4 : index
    %c0_76 = arith.constant 0 : index
    %c0_77 = arith.constant 0 : index
    %119 = vector.load %arg10[%c4, %c0_76, %c0_77] : memref<5x128x128xbf16, #tpu.memory_space<vmem>>, vector<1x128x128xbf16>
    %120 = vector.shape_cast %119 : vector<1x128x128xbf16> to vector<128x128xbf16>
    %121 = arith.truncf %46 : vector<16x128xf32> to vector<16x128xbf16>
    %cst_78 = arith.constant dense<0.000000e+00> : vector<16x128xf32>
    %122 = tpu.matmul %121, %120, %cst_78 {dimension_numbers = #tpu.dot_dimension_numbers<[1], [0], [0], [1], [0, 0, 1, 1], [], []>} : vector<16x128xbf16>, vector<128x128xbf16>, vector<16x128xf32> -> vector<16x128xf32>
    %c4_79 = arith.constant 4 : index
    %c0_80 = arith.constant 0 : index
    %c0_81 = arith.constant 0 : index
    %123 = vector.load %arg11[%c4_79, %c0_80, %c0_81] : memref<5x1x128xf32, #tpu.memory_space<vmem>>, vector<1x1x128xf32>
    %124 = vector.shape_cast %123 : vector<1x1x128xf32> to vector<1x128xf32>
    %125 = vector.broadcast %124 : vector<1x128xf32> to vector<16x128xf32>
    %126 = arith.addf %122, %125 : vector<16x128xf32>
    %cst_82 = arith.constant 0.000000e+00 : f32
    %127 = vector.broadcast %cst_82 : f32 to vector<16x128xf32>
    %128 = arith.maximumf %126, %127 : vector<16x128xf32>
    %c4_83 = arith.constant 4 : index
    %c0_84 = arith.constant 0 : index
    %c0_85 = arith.constant 0 : index
    %129 = vector.load %arg12[%c4_83, %c0_84, %c0_85] : memref<5x128x128xbf16, #tpu.memory_space<vmem>>, vector<1x128x128xbf16>
    %130 = vector.shape_cast %129 : vector<1x128x128xbf16> to vector<128x128xbf16>
    %131 = arith.truncf %128 : vector<16x128xf32> to vector<16x128xbf16>
    %cst_86 = arith.constant dense<0.000000e+00> : vector<16x128xf32>
    %132 = tpu.matmul %131, %130, %cst_86 {dimension_numbers = #tpu.dot_dimension_numbers<[1], [0], [0], [1], [0, 0, 1, 1], [], []>} : vector<16x128xbf16>, vector<128x128xbf16>, vector<16x128xf32> -> vector<16x128xf32>
    %133 = arith.addf %118, %132 : vector<16x128xf32>
    %c0_87 = arith.constant 0 : index
    %c0_88 = arith.constant 0 : index
    %134 = vector.load %arg13[%c0_87, %c0_88] : memref<1x128xf32, #tpu.memory_space<vmem>>, vector<1x128xf32>
    %135 = vector.broadcast %134 : vector<1x128xf32> to vector<16x128xf32>
    %136 = arith.addf %133, %135 : vector<16x128xf32>
    %cst_89 = arith.constant 0.000000e+00 : f32
    %137 = vector.broadcast %cst_89 : f32 to vector<16x128xf32>
    %138 = arith.subf %137, %136 : vector<16x128xf32>
    %139 = math.exp %138 : vector<16x128xf32>
    %cst_90 = arith.constant 1.000000e+00 : f32
    %140 = vector.broadcast %cst_90 : f32 to vector<16x128xf32>
    %141 = arith.addf %140, %139 : vector<16x128xf32>
    %cst_91 = arith.constant 1.000000e+00 : f32
    %142 = vector.broadcast %cst_91 : f32 to vector<16x128xf32>
    %143 = arith.divf %142, %141 : vector<16x128xf32>
    %c0_92 = arith.constant 0 : index
    %c0_93 = arith.constant 0 : index
    %144 = vector.load %arg14[%c0_92, %c0_93] : memref<16x128xf32, #tpu.memory_space<vmem>>, vector<16x128xf32>
    tpu.vector_store %arg14[%c0_92, %c0_93], %59 {strides = array<i32>} : memref<16x128xf32, #tpu.memory_space<vmem>>, vector<16x128xf32>,
    %c0_94 = arith.constant 0 : index
    %c0_95 = arith.constant 0 : index
    %145 = vector.load %arg15[%c0_94, %c0_95] : memref<16x128xf32, #tpu.memory_space<vmem>>, vector<16x128xf32>
    tpu.vector_store %arg15[%c0_94, %c0_95], %143 {strides = array<i32>} : memref<16x128xf32, #tpu.memory_space<vmem>>, vector<16x128xf32>,
    return
  }
  func.func @transform_0(%arg0: i32) -> (i32, i32) {
    %c0_i32 = arith.constant 0 : i32
    %c0_i32_0 = arith.constant 0 : i32
    return %arg0, %c0_i32 : i32, i32
  }
  func.func @transform_1(%arg0: i32) -> (i32, i32) {
    %c0_i32 = arith.constant 0 : i32
    %c0_i32_0 = arith.constant 0 : i32
    %c0_i32_1 = arith.constant 0 : i32
    return %c0_i32, %c0_i32_0 : i32, i32
  }
  func.func @transform_2(%arg0: i32) -> (i32, i32) {
    %c0_i32 = arith.constant 0 : i32
    %c0_i32_0 = arith.constant 0 : i32
    %c0_i32_1 = arith.constant 0 : i32
    return %c0_i32, %c0_i32_0 : i32, i32
  }
  func.func @transform_3(%arg0: i32) -> (i32, i32) {
    %c0_i32 = arith.constant 0 : i32
    %c0_i32_0 = arith.constant 0 : i32
    %c0_i32_1 = arith.constant 0 : i32
    return %c0_i32, %c0_i32_0 : i32, i32
  }
  func.func @transform_4(%arg0: i32) -> (i32, i32) {
    %c0_i32 = arith.constant 0 : i32
    %c0_i32_0 = arith.constant 0 : i32
    %c0_i32_1 = arith.constant 0 : i32
    return %c0_i32, %c0_i32_0 : i32, i32
  }
  func.func @transform_5(%arg0: i32) -> (i32, i32) {
    %c0_i32 = arith.constant 0 : i32
    %c0_i32_0 = arith.constant 0 : i32
    %c0_i32_1 = arith.constant 0 : i32
    return %c0_i32, %c0_i32_0 : i32, i32
  }
  func.func @transform_6(%arg0: i32) -> (i32, i32) {
    %c0_i32 = arith.constant 0 : i32
    %c0_i32_0 = arith.constant 0 : i32
    %c0_i32_1 = arith.constant 0 : i32
    return %c0_i32, %c0_i32_0 : i32, i32
  }
  func.func @transform_7(%arg0: i32) -> (i32, i32) {
    %c0_i32 = arith.constant 0 : i32
    %c0_i32_0 = arith.constant 0 : i32
    %c0_i32_1 = arith.constant 0 : i32
    return %c0_i32, %c0_i32_0 : i32, i32
  }
  func.func @transform_8(%arg0: i32) -> (i32, i32) {
    %c0_i32 = arith.constant 0 : i32
    %c0_i32_0 = arith.constant 0 : i32
    %c0_i32_1 = arith.constant 0 : i32
    return %c0_i32, %c0_i32_0 : i32, i32
  }
  func.func @transform_9(%arg0: i32) -> (i32, i32, i32) {
    %c0_i32 = arith.constant 0 : i32
    %c0_i32_0 = arith.constant 0 : i32
    %c0_i32_1 = arith.constant 0 : i32
    %c0_i32_2 = arith.constant 0 : i32
    return %c0_i32, %c0_i32_0, %c0_i32_1 : i32, i32, i32
  }
  func.func @transform_10(%arg0: i32) -> (i32, i32, i32) {
    %c0_i32 = arith.constant 0 : i32
    %c0_i32_0 = arith.constant 0 : i32
    %c0_i32_1 = arith.constant 0 : i32
    %c0_i32_2 = arith.constant 0 : i32
    return %c0_i32, %c0_i32_0, %c0_i32_1 : i32, i32, i32
  }
  func.func @transform_11(%arg0: i32) -> (i32, i32, i32) {
    %c0_i32 = arith.constant 0 : i32
    %c0_i32_0 = arith.constant 0 : i32
    %c0_i32_1 = arith.constant 0 : i32
    %c0_i32_2 = arith.constant 0 : i32
    return %c0_i32, %c0_i32_0, %c0_i32_1 : i32, i32, i32
  }
  func.func @transform_12(%arg0: i32) -> (i32, i32) {
    %c0_i32 = arith.constant 0 : i32
    %c0_i32_0 = arith.constant 0 : i32
    %c0_i32_1 = arith.constant 0 : i32
    return %c0_i32, %c0_i32_0 : i32, i32
  }
  func.func @transform_13(%arg0: i32) -> (i32, i32) {
    %c0_i32 = arith.constant 0 : i32
    %c0_i32_0 = arith.constant 0 : i32
    return %arg0, %c0_i32 : i32, i32
  }
  func.func @transform_14(%arg0: i32) -> (i32, i32) {
    %c0_i32 = arith.constant 0 : i32
    %c0_i32_0 = arith.constant 0 : i32
    return %arg0, %c0_i32 : i32, i32
  }
}

</mosaic_0001>

<llo_original>
// kernel: tpu_custom_call.1
$region0: #{tpu_custom_call.1}
  #allocation0 [shape = 'u32[]', space=smem, size = 0x4, offset = 0x4, fixed_abs, tag = 'smem constant byte address 0x4 - core index']
  #allocation1 [shape = 'u32[144,128]{1,0:T(1,128)}', space=vmem, size = 0x12000, scoped, tag = 'internal scratch']
  %s0 = inlined_call_operand.hbm [shape: bf16[32,32], index: 0, kind: input, shape index: {}]
  %s1 = inlined_call_operand.hbm [shape: bf16[32,128], index: 1, kind: input, shape index: {}]
  %s2 = inlined_call_operand.vmem [shape: f32[1,128], index: 2, kind: input, shape index: {}]
  %s3 = inlined_call_operand.hbm [shape: bf16[128,128], index: 3, kind: input, shape index: {}]
  %s4 = inlined_call_operand.vmem [shape: f32[1,128], index: 4, kind: input, shape index: {}]
  %s5 = inlined_call_operand.hbm [shape: bf16[32,512], index: 5, kind: input, shape index: {}]
  %s6 = inlined_call_operand.vmem [shape: f32[1,512], index: 6, kind: input, shape index: {}]
  %s7 = inlined_call_operand.hbm [shape: bf16[128,128], index: 7, kind: input, shape index: {}]
  %s8 = inlined_call_operand.vmem [shape: f32[1,128], index: 8, kind: input, shape index: {}]
  %s9 = inlined_call_operand.hbm [shape: bf16[5,128,128], index: 9, kind: input, shape index: {}]
  %s10 = inlined_call_operand.vmem [shape: f32[5,1,128], index: 10, kind: input, shape index: {}]
  %s11 = inlined_call_operand.hbm [shape: bf16[5,128,128], index: 11, kind: input, shape index: {}]
  %s12 = inlined_call_operand.vmem [shape: f32[1,128], index: 12, kind: input, shape index: {}]
  %s13 = inlined_call_operand.hbm [shape: f32[32,128], index: 13, kind: output, shape index: {0}]
  %s14 = inlined_call_operand.hbm [shape: f32[32,128], index: 14, kind: output, shape index: {1}]
  %15 = xla_tuple %s13, %s14
  %s16 = sld [smem:[#allocation0]]
  $region121: #{tpu_custom_call.1} parent=0
    _
  %s18 = ssub.s32 1, %s16
  %s19 = scalar_select 0, %s18, %s16
  $region1: #{tpu_custom_call.1} parent=0
    #allocation2 [shape = 'u8[8192]{0}', space=vmem, size = 0x2000, scoped, tag = 'input window, operand 0']
    #allocation3 [shape = 's32[2]{0}', space=sflag, size = 0x8, scoped, tag = 'scoped memory for tpu_custom_call.1']
    #allocation4 [shape = 's32[2]{0}', space=sflag, size = 0x8, scoped, tag = 'scoped memory for tpu_custom_call.1']
    #allocation5 [shape = 'u8[8192]{0}', space=vmem, size = 0x2000, scoped, tag = 'input window, operand 1, single buffered']
    #allocation6 [shape = 's32[1]{0}', space=sflag, size = 0x4, scoped, tag = 'scoped memory for tpu_custom_call.1']
    #allocation7 [shape = 'u8[32768]{0}', space=vmem, size = 0x8000, scoped, tag = 'input window, operand 3, single buffered']
    #allocation8 [shape = 'u8[32768]{0}', space=vmem, size = 0x8000, scoped, tag = 'input window, operand 5, single buffered']
    #allocation9 [shape = 's32[1]{0}', space=sflag, size = 0x4, scoped, tag = 'scoped memory for tpu_custom_call.1']
    #allocation10 [shape = 'u8[32768]{0}', space=vmem, size = 0x8000, scoped, tag = 'input window, operand 7, single buffered']
    #allocation11 [shape = 'u8[163840]{0}', space=vmem, size = 0x28000, scoped, tag = 'input window, operand 9, single buffered']
    #allocation12 [shape = 's32[1]{0}', space=sflag, size = 0x4, scoped, tag = 'scoped memory for tpu_custom_call.1']
    #allocation13 [shape = 'u8[163840]{0}', space=vmem, size = 0x28000, scoped, tag = 'input window, operand 11, single buffered']
    #allocation14 [shape = 'u8[16384]{0}', space=vmem, size = 0x4000, scoped, tag = 'output window, operand 0']
    #allocation15 [shape = 'u8[16384]{0}', space=vmem, size = 0x4000, scoped, tag = 'output window, operand 1']
    #allocation16 [shape = 's32[2]{0}', space=sflag, size = 0x8, scoped, tag = 'scoped memory for tpu_custom_call.1']
    %20 = vsyncpa [#allocation3], 0
    %s21 = scalar_lea.sflag [#allocation3], 1
    %22 = vsyncpa %s21, 0
    %23 = vsyncpa [#allocation6], 0
    %24 = vsyncpa [#allocation9], 0
    %25 = vsyncpa [#allocation12], 0
    %26 = vsyncpa [#allocation4], 0
    %s27 = scalar_lea.sflag [#allocation4], 1
    %28 = vsyncpa %s27, 0
    %29 = vsyncpa [#allocation16], 0
    %s30 = scalar_lea.sflag [#allocation16], 1
    %31 = vsyncpa %s30, 0
    loop: start=0, step=1, limit=4
    $region2: #{tpu_custom_call.1} parent=1 // loop_pre_header
      _
    $region3: #{tpu_custom_call.1} parent=1 // loop_header
      %s33 = sphi 0, %s37
      %p34 = scmp.ge.s32.totalorder %s33, 4
      %s43 = sphi 0, %s45
      %s46 = sphi 0, %s43
      %s47 = sphi 0, %s46
      %s63 = sphi 0, %s47
      %s67 = sphi 0, %s67
      %s69 = sphi 0, %s67
      %s70 = sphi 0, %s69
      %s84 = sphi 0, %s70
      %s88 = sphi 0, %s88
      %s90 = sphi 0, %s88
      %s91 = sphi 0, %s90
      %s105 = sphi 0, %s91
      %s109 = sphi 0, %s109
      %s111 = sphi 0, %s109
      %s112 = sphi 0, %s111
      %s126 = sphi 0, %s112
      %s130 = sphi 0, %s130
      %s132 = sphi 0, %s130
      %s133 = sphi 0, %s132
      %s147 = sphi 0, %s133
      %s151 = sphi 0, %s151
      %s153 = sphi 0, %s151
      %s154 = sphi 0, %s153
      %s168 = sphi 0, %s154
      %s172 = sphi 0, %s172
      %s174 = sphi 0, %s172
      %s175 = sphi 0, %s174
      %s189 = sphi 0, %s175
      %s193 = sphi 0, %s193
      %s195 = sphi 0, %s193
      %s196 = sphi 0, %s195
      %s210 = sphi 0, %s196
      %s214 = sphi 0, %s214
      %s216 = sphi 0, %s214
      %s217 = sphi 0, %s216
      %s231 = sphi 0, %s217
      %s235 = sphi 0, %s235
      %s237 = sphi 0, %s235
      %s238 = sphi 0, %s237
      %s252 = sphi 0, %s238
      %s256 = sphi 0, %s256
      %s258 = sphi 0, %s256
      %s259 = sphi 0, %s258
      %s273 = sphi 0, %s259
      %s277 = sphi 0, %s277
      %s279 = sphi 0, %s277
      %s280 = sphi 0, %s279
      %s294 = sphi 0, %s280
      %s298 = sphi 0, %s298
      %s300 = sphi 0, %s298
      %s301 = sphi 0, %s300
      %s315 = sphi 0, %s301
      %s321 = sphi 0, %s323
      %s324 = sphi 0, %s321
      %s325 = sphi 0, %s324
      %s341 = sphi 0, %s325
      %s347 = sphi 0, %s349
      %s350 = sphi 0, %s347
      %s351 = sphi 0, %s350
      %s367 = sphi 0, %s351
    $region4: #{tpu_custom_call.1} parent=1 // loop_header_branch
      %36 = sbr.rel (%p34) target = $region8
    $region5: #{tpu_custom_call.1} parent=1 // loop_body
      %s38 = ssub.s32 %s33, 1
      %s39 = ssub.s32 %s33, 2
      %s40 = sadd.s32 %s33, 1
      %s41 = ssub.s32 %s33, %s40
      %p42 = scmp.eq.s32.totalorder %s41, 0
      %s44 = sadd.s32 %s43, 1
      %s45 = scalar_select %p42, %s43, %s44
      %p48 = pneg %p42
      %p49 = scmp.eq.s32.totalorder %s33, 1
      %p50 = por %p48, %p49
      %p51 = scmp.ne.s32.totalorder %s43, %s46
      %p52 = scmp.eq.s32.totalorder %s33, 0
      %p53 = por %p51, %p52
      %p54 = scmp.ne.s32.totalorder %s43, %s46
      %p55 = scmp.eq.s32.totalorder %s38, 1
      %p56 = por %p54, %p55
      %p57 = scmp.ne.s32.totalorder %s46, %s47
      %p58 = scmp.eq.s32.totalorder %s38, 0
      %p59 = por %p57, %p58
      %p60 = scmp.ne.s32.totalorder %s46, %s47
      %p61 = scmp.eq.s32.totalorder %s39, 1
      %p62 = por %p60, %p61
      %p64 = scmp.ne.s32.totalorder %s47, %s63
      %p65 = scmp.eq.s32.totalorder %s39, 0
      %p66 = por %p64, %p65
      %s68 = sadd.s32 %s67, 1
      %p71 = scmp.eq.s32.totalorder %s33, 1
      %p72 = scmp.ne.s32.totalorder %s67, %s69
      %p73 = scmp.eq.s32.totalorder %s33, 0
      %p74 = por %p72, %p73
      %p75 = scmp.ne.s32.totalorder %s67, %s69
      %p76 = scmp.eq.s32.totalorder %s38, 1
      %p77 = por %p75, %p76
      %p78 = scmp.ne.s32.totalorder %s69, %s70
      %p79 = scmp.eq.s32.totalorder %s38, 0
      %p80 = por %p78, %p79
      %p81 = scmp.ne.s32.totalorder %s69, %s70
      %p82 = scmp.eq.s32.totalorder %s39, 1
      %p83 = por %p81, %p82
      %p85 = scmp.ne.s32.totalorder %s70, %s84
      %p86 = scmp.eq.s32.totalorder %s39, 0
      %p87 = por %p85, %p86
      %s89 = sadd.s32 %s88, 1
      %p92 = scmp.eq.s32.totalorder %s33, 1
      %p93 = scmp.ne.s32.totalorder %s88, %s90
      %p94 = scmp.eq.s32.totalorder %s33, 0
      %p95 = por %p93, %p94
      %p96 = scmp.ne.s32.totalorder %s88, %s90
      %p97 = scmp.eq.s32.totalorder %s38, 1
      %p98 = por %p96, %p97
      %p99 = scmp.ne.s32.totalorder %s90, %s91
      %p100 = scmp.eq.s32.totalorder %s38, 0
      %p101 = por %p99, %p100
      %p102 = scmp.ne.s32.totalorder %s90, %s91
      %p103 = scmp.eq.s32.totalorder %s39, 1
      %p104 = por %p102, %p103
      %p106 = scmp.ne.s32.totalorder %s91, %s105
      %p107 = scmp.eq.s32.totalorder %s39, 0
      %p108 = por %p106, %p107
      %s110 = sadd.s32 %s109, 1
      %p113 = scmp.eq.s32.totalorder %s33, 1
      %p114 = scmp.ne.s32.totalorder %s109, %s111
      %p115 = scmp.eq.s32.totalorder %s33, 0
      %p116 = por %p114, %p115
      %p117 = scmp.ne.s32.totalorder %s109, %s111
      %p118 = scmp.eq.s32.totalorder %s38, 1
      %p119 = por %p117, %p118
      %p120 = scmp.ne.s32.totalorder %s111, %s112
      %p121 = scmp.eq.s32.totalorder %s38, 0
      %p122 = por %p120, %p121
      %p123 = scmp.ne.s32.totalorder %s111, %s112
      %p124 = scmp.eq.s32.totalorder %s39, 1
      %p125 = por %p123, %p124
      %p127 = scmp.ne.s32.totalorder %s112, %s126
      %p128 = scmp.eq.s32.totalorder %s39, 0
      %p129 = por %p127, %p128
      %s131 = sadd.s32 %s130, 1
      %p134 = scmp.eq.s32.totalorder %s33, 1
      %p135 = scmp.ne.s32.totalorder %s130, %s132
      %p136 = scmp.eq.s32.totalorder %s33, 0
      %p137 = por %p135, %p136
      %p138 = scmp.ne.s32.totalorder %s130, %s132
      %p139 = scmp.eq.s32.totalorder %s38, 1
      %p140 = por %p138, %p139
      %p141 = scmp.ne.s32.totalorder %s132, %s133
      %p142 = scmp.eq.s32.totalorder %s38, 0
      %p143 = por %p141, %p142
      %p144 = scmp.ne.s32.totalorder %s132, %s133
      %p145 = scmp.eq.s32.totalorder %s39, 1
      %p146 = por %p144, %p145
      %p148 = scmp.ne.s32.totalorder %s133, %s147
      %p149 = scmp.eq.s32.totalorder %s39, 0
      %p150 = por %p148, %p149
      %s152 = sadd.s32 %s151, 1
      %p155 = scmp.eq.s32.totalorder %s33, 1
      %p156 = scmp.ne.s32.totalorder %s151, %s153
      %p157 = scmp.eq.s32.totalorder %s33, 0
      %p158 = por %p156, %p157
      %p159 = scmp.ne.s32.totalorder %s151, %s153
      %p160 = scmp.eq.s32.totalorder %s38, 1
      %p161 = por %p159, %p160
      %p162 = scmp.ne.s32.totalorder %s153, %s154
      %p163 = scmp.eq.s32.totalorder %s38, 0
      %p164 = por %p162, %p163
      %p165 = scmp.ne.s32.totalorder %s153, %s154
      %p166 = scmp.eq.s32.totalorder %s39, 1
      %p167 = por %p165, %p166
      %p169 = scmp.ne.s32.totalorder %s154, %s168
      %p170 = scmp.eq.s32.totalorder %s39, 0
      %p171 = por %p169, %p170
      %s173 = sadd.s32 %s172, 1
      %p176 = scmp.eq.s32.totalorder %s33, 1
      %p177 = scmp.ne.s32.totalorder %s172, %s174
      %p178 = scmp.eq.s32.totalorder %s33, 0
      %p179 = por %p177, %p178
      %p180 = scmp.ne.s32.totalorder %s172, %s174
      %p181 = scmp.eq.s32.totalorder %s38, 1
      %p182 = por %p180, %p181
      %p183 = scmp.ne.s32.totalorder %s174, %s175
      %p184 = scmp.eq.s32.totalorder %s38, 0
      %p185 = por %p183, %p184
      %p186 = scmp.ne.s32.totalorder %s174, %s175
      %p187 = scmp.eq.s32.totalorder %s39, 1
      %p188 = por %p186, %p187
      %p190 = scmp.ne.s32.totalorder %s175, %s189
      %p191 = scmp.eq.s32.totalorder %s39, 0
      %p192 = por %p190, %p191
      %s194 = sadd.s32 %s193, 1
      %p197 = scmp.eq.s32.totalorder %s33, 1
      %p198 = scmp.ne.s32.totalorder %s193, %s195
      %p199 = scmp.eq.s32.totalorder %s33, 0
      %p200 = por %p198, %p199
      %p201 = scmp.ne.s32.totalorder %s193, %s195
      %p202 = scmp.eq.s32.totalorder %s38, 1
      %p203 = por %p201, %p202
      %p204 = scmp.ne.s32.totalorder %s195, %s196
      %p205 = scmp.eq.s32.totalorder %s38, 0
      %p206 = por %p204, %p205
      %p207 = scmp.ne.s32.totalorder %s195, %s196
      %p208 = scmp.eq.s32.totalorder %s39, 1
      %p209 = por %p207, %p208
      %p211 = scmp.ne.s32.totalorder %s196, %s210
      %p212 = scmp.eq.s32.totalorder %s39, 0
      %p213 = por %p211, %p212
      %s215 = sadd.s32 %s214, 1
      %p218 = scmp.eq.s32.totalorder %s33, 1
      %p219 = scmp.ne.s32.totalorder %s214, %s216
      %p220 = scmp.eq.s32.totalorder %s33, 0
      %p221 = por %p219, %p220
      %p222 = scmp.ne.s32.totalorder %s214, %s216
      %p223 = scmp.eq.s32.totalorder %s38, 1
      %p224 = por %p222, %p223
      %p225 = scmp.ne.s32.totalorder %s216, %s217
      %p226 = scmp.eq.s32.totalorder %s38, 0
      %p227 = por %p225, %p226
      %p228 = scmp.ne.s32.totalorder %s216, %s217
      %p229 = scmp.eq.s32.totalorder %s39, 1
      %p230 = por %p228, %p229
      %p232 = scmp.ne.s32.totalorder %s217, %s231
      %p233 = scmp.eq.s32.totalorder %s39, 0
      %p234 = por %p232, %p233
      %s236 = sadd.s32 %s235, 1
      %p239 = scmp.eq.s32.totalorder %s33, 1
      %p240 = scmp.ne.s32.totalorder %s235, %s237
      %p241 = scmp.eq.s32.totalorder %s33, 0
      %p242 = por %p240, %p241
      %p243 = scmp.ne.s32.totalorder %s235, %s237
      %p244 = scmp.eq.s32.totalorder %s38, 1
      %p245 = por %p243, %p244
      %p246 = scmp.ne.s32.totalorder %s237, %s238
      %p247 = scmp.eq.s32.totalorder %s38, 0
      %p248 = por %p246, %p247
      %p249 = scmp.ne.s32.totalorder %s237, %s238
      %p250 = scmp.eq.s32.totalorder %s39, 1
      %p251 = por %p249, %p250
      %p253 = scmp.ne.s32.totalorder %s238, %s252
      %p254 = scmp.eq.s32.totalorder %s39, 0
      %p255 = por %p253, %p254
      %s257 = sadd.s32 %s256, 1
      %p260 = scmp.eq.s32.totalorder %s33, 1
      %p261 = scmp.ne.s32.totalorder %s256, %s258
      %p262 = scmp.eq.s32.totalorder %s33, 0
      %p263 = por %p261, %p262
      %p264 = scmp.ne.s32.totalorder %s256, %s258
      %p265 = scmp.eq.s32.totalorder %s38, 1
      %p266 = por %p264, %p265
      %p267 = scmp.ne.s32.totalorder %s258, %s259
      %p268 = scmp.eq.s32.totalorder %s38, 0
      %p269 = por %p267, %p268
      %p270 = scmp.ne.s32.totalorder %s258, %s259
      %p271 = scmp.eq.s32.totalorder %s39, 1
      %p272 = por %p270, %p271
      %p274 = scmp.ne.s32.totalorder %s259, %s273
      %p275 = scmp.eq.s32.totalorder %s39, 0
      %p276 = por %p274, %p275
      %s278 = sadd.s32 %s277, 1
      %p281 = scmp.eq.s32.totalorder %s33, 1
      %p282 = scmp.ne.s32.totalorder %s277, %s279
      %p283 = scmp.eq.s32.totalorder %s33, 0
      %p284 = por %p282, %p283
      %p285 = scmp.ne.s32.totalorder %s277, %s279
      %p286 = scmp.eq.s32.totalorder %s38, 1
      %p287 = por %p285, %p286
      %p288 = scmp.ne.s32.totalorder %s279, %s280
      %p289 = scmp.eq.s32.totalorder %s38, 0
      %p290 = por %p288, %p289
      %p291 = scmp.ne.s32.totalorder %s279, %s280
      %p292 = scmp.eq.s32.totalorder %s39, 1
      %p293 = por %p291, %p292
      %p295 = scmp.ne.s32.totalorder %s280, %s294
      %p296 = scmp.eq.s32.totalorder %s39, 0
      %p297 = por %p295, %p296
      %s299 = sadd.s32 %s298, 1
      %p302 = scmp.eq.s32.totalorder %s33, 1
      %p303 = scmp.ne.s32.totalorder %s298, %s300
      %p304 = scmp.eq.s32.totalorder %s33, 0
      %p305 = por %p303, %p304
      %p306 = scmp.ne.s32.totalorder %s298, %s300
      %p307 = scmp.eq.s32.totalorder %s38, 1
      %p308 = por %p306, %p307
      %p309 = scmp.ne.s32.totalorder %s300, %s301
      %p310 = scmp.eq.s32.totalorder %s38, 0
      %p311 = por %p309, %p310
      %p312 = scmp.ne.s32.totalorder %s300, %s301
      %p313 = scmp.eq.s32.totalorder %s39, 1
      %p314 = por %p312, %p313
      %p316 = scmp.ne.s32.totalorder %s301, %s315
      %p317 = scmp.eq.s32.totalorder %s39, 0
      %p318 = por %p316, %p317
      %s319 = ssub.s32 %s33, %s40
      %p320 = scmp.eq.s32.totalorder %s319, 0
      %s322 = sadd.s32 %s321, 1
      %s323 = scalar_select %p320, %s321, %s322
      %p326 = pneg %p320
      %p327 = scmp.eq.s32.totalorder %s33, 1
      %p328 = por %p326, %p327
      %p329 = scmp.ne.s32.totalorder %s321, %s324
      %p330 = scmp.eq.s32.totalorder %s33, 0
      %p331 = por %p329, %p330
      %p332 = scmp.ne.s32.totalorder %s321, %s324
      %p333 = scmp.eq.s32.totalorder %s38, 1
      %p334 = por %p332, %p333
      %p335 = scmp.ne.s32.totalorder %s324, %s325
      %p336 = scmp.eq.s32.totalorder %s38, 0
      %p337 = por %p335, %p336
      %p338 = scmp.ne.s32.totalorder %s324, %s325
      %p339 = scmp.eq.s32.totalorder %s39, 1
      %p340 = por %p338, %p339
      %p342 = scmp.ne.s32.totalorder %s325, %s341
      %p343 = scmp.eq.s32.totalorder %s39, 0
      %p344 = por %p342, %p343
      %s345 = ssub.s32 %s33, %s40
      %p346 = scmp.eq.s32.totalorder %s345, 0
      %s348 = sadd.s32 %s347, 1
      %s349 = scalar_select %p346, %s347, %s348
      %p352 = pneg %p346
      %p353 = scmp.eq.s32.totalorder %s33, 1
      %p354 = por %p352, %p353
      %p355 = scmp.ne.s32.totalorder %s347, %s350
      %p356 = scmp.eq.s32.totalorder %s33, 0
      %p357 = por %p355, %p356
      %p358 = scmp.ne.s32.totalorder %s347, %s350
      %p359 = scmp.eq.s32.totalorder %s38, 1
      %p360 = por %p358, %p359
      %p361 = scmp.ne.s32.totalorder %s350, %s351
      %p362 = scmp.eq.s32.totalorder %s38, 0
      %p363 = por %p361, %p362
      %p364 = scmp.ne.s32.totalorder %s350, %s351
      %p365 = scmp.eq.s32.totalorder %s39, 1
      %p366 = por %p364, %p365
      %p368 = scmp.ne.s32.totalorder %s351, %s367
      %p369 = scmp.eq.s32.totalorder %s39, 0
      %p370 = por %p368, %p369
      %p371 = scmp.le.s32.totalorder 1, %s33
      %p372 = scmp.lt.s32.totalorder %s33, 3
      %p373 = pnand %p371, %p372
      %p374 = pneg %p373
      // Predicated region
      $region9: #{tpu_custom_call.1} parent=5 // pred_check
        _
      $region10: #{tpu_custom_call.1} parent=5 // pred_check_branch
        %376 = sbr.rel (%p373) target = $region12
      $region11: #{tpu_custom_call.1} parent=5 // pred_region
        %s377 = ssub.s32 %s33, 1
        // Predicated region
        $region13: #{tpu_custom_call.1} parent=11 // pred_check
          %p378 = pneg %p80
        $region14: #{tpu_custom_call.1} parent=11 // pred_check_branch
          %380 = sbr.rel (%p378) target = $region16
        $region15: #{tpu_custom_call.1} parent=11 // pred_region
          %s382 = ssub.s32 256, 256
          %383 = vsyncadd [#allocation6], %s382
          %s384 = sshll.u32 [#allocation5], 4
          %s385 = int_to_ptr.vmem [resolvable:$true] %s384
          %390 = dma.hbm_to_vmem [thread:$0]  %s1, 256, %s385, [#allocation6], 64, 64, 4
        $region16: #{tpu_custom_call.1} parent=11 // pred_fallthru
          _
        // Predicated region
        $region17: #{tpu_custom_call.1} parent=11 // pred_check
          %p391 = pneg %p101
        $region18: #{tpu_custom_call.1} parent=11 // pred_check_branch
          %393 = sbr.rel (%p391) target = $region20
        $region19: #{tpu_custom_call.1} parent=11 // pred_region
          _
        $region20: #{tpu_custom_call.1} parent=11 // pred_fallthru
          _
        // Predicated region
        $region21: #{tpu_custom_call.1} parent=11 // pred_check
          %p394 = pneg %p122
        $region22: #{tpu_custom_call.1} parent=11 // pred_check_branch
          %396 = sbr.rel (%p394) target = $region24
        $region23: #{tpu_custom_call.1} parent=11 // pred_region
          %s398 = ssub.s32 1024, 1024
          %399 = vsyncadd [#allocation6], %s398
          %s400 = sshll.u32 [#allocation7], 4
          %s401 = int_to_ptr.vmem [resolvable:$true] %s400
          %406 = dma.hbm_to_vmem [thread:$0]  %s3, 1024, %s401, [#allocation6], 64, 64, 4
        $region24: #{tpu_custom_call.1} parent=11 // pred_fallthru
          _
        // Predicated region
        $region25: #{tpu_custom_call.1} parent=11 // pred_check
          %p407 = pneg %p143
        $region26: #{tpu_custom_call.1} parent=11 // pred_check_branch
          %409 = sbr.rel (%p407) target = $region28
        $region27: #{tpu_custom_call.1} parent=11 // pred_region
          _
        $region28: #{tpu_custom_call.1} parent=11 // pred_fallthru
          _
        // Predicated region
        $region29: #{tpu_custom_call.1} parent=11 // pred_check
          %p410 = pneg %p164
        $region30: #{tpu_custom_call.1} parent=11 // pred_check_branch
          %412 = sbr.rel (%p410) target = $region32
        $region31: #{tpu_custom_call.1} parent=11 // pred_region
          %s414 = ssub.s32 1024, 1024
          %415 = vsyncadd [#allocation9], %s414
          %s416 = sshll.u32 [#allocation8], 4
          %s417 = int_to_ptr.vmem [resolvable:$true] %s416
          %422 = dma.hbm_to_vmem [thread:$0]  %s5, 1024, %s417, [#allocation9], 256, 256, 16
        $region32: #{tpu_custom_call.1} parent=11 // pred_fallthru
          _
        // Predicated region
        $region33: #{tpu_custom_call.1} parent=11 // pred_check
          %p423 = pneg %p185
        $region34: #{tpu_custom_call.1} parent=11 // pred_check_branch
          %425 = sbr.rel (%p423) target = $region36
        $region35: #{tpu_custom_call.1} parent=11 // pred_region
          _
        $region36: #{tpu_custom_call.1} parent=11 // pred_fallthru
          _
        // Predicated region
        $region37: #{tpu_custom_call.1} parent=11 // pred_check
          %p426 = pneg %p206
        $region38: #{tpu_custom_call.1} parent=11 // pred_check_branch
          %428 = sbr.rel (%p426) target = $region40
        $region39: #{tpu_custom_call.1} parent=11 // pred_region
          %s430 = ssub.s32 1024, 1024
          %431 = vsyncadd [#allocation9], %s430
          %s432 = sshll.u32 [#allocation10], 4
          %s433 = int_to_ptr.vmem [resolvable:$true] %s432
          %438 = dma.hbm_to_vmem [thread:$0]  %s7, 1024, %s433, [#allocation9], 64, 64, 4
        $region40: #{tpu_custom_call.1} parent=11 // pred_fallthru
          _
        // Predicated region
        $region41: #{tpu_custom_call.1} parent=11 // pred_check
          %p439 = pneg %p227
        $region42: #{tpu_custom_call.1} parent=11 // pred_check_branch
          %441 = sbr.rel (%p439) target = $region44
        $region43: #{tpu_custom_call.1} parent=11 // pred_region
          _
        $region44: #{tpu_custom_call.1} parent=11 // pred_fallthru
          _
        // Predicated region
        $region45: #{tpu_custom_call.1} parent=11 // pred_check
          %p442 = pneg %p248
        $region46: #{tpu_custom_call.1} parent=11 // pred_check_branch
          %444 = sbr.rel (%p442) target = $region48
        $region47: #{tpu_custom_call.1} parent=11 // pred_region
          %s446 = ssub.s32 5120, 5120
          %447 = vsyncadd [#allocation12], %s446
          %s448 = sshll.u32 [#allocation11], 4
          %s449 = int_to_ptr.vmem [resolvable:$true] %s448
          %454 = dma.hbm_to_vmem [thread:$0]  %s9, 5120, %s449, [#allocation12], 64, 64, 4
        $region48: #{tpu_custom_call.1} parent=11 // pred_fallthru
          _
        // Predicated region
        $region49: #{tpu_custom_call.1} parent=11 // pred_check
          %p455 = pneg %p269
        $region50: #{tpu_custom_call.1} parent=11 // pred_check_branch
          %457 = sbr.rel (%p455) target = $region52
        $region51: #{tpu_custom_call.1} parent=11 // pred_region
          _
        $region52: #{tpu_custom_call.1} parent=11 // pred_fallthru
          _
        // Predicated region
        $region53: #{tpu_custom_call.1} parent=11 // pred_check
          %p458 = pneg %p290
        $region54: #{tpu_custom_call.1} parent=11 // pred_check_branch
          %460 = sbr.rel (%p458) target = $region56
        $region55: #{tpu_custom_call.1} parent=11 // pred_region
          %s462 = ssub.s32 5120, 5120
          %463 = vsyncadd [#allocation12], %s462
          %s464 = sshll.u32 [#allocation13], 4
          %s465 = int_to_ptr.vmem [resolvable:$true] %s464
          %470 = dma.hbm_to_vmem [thread:$0]  %s11, 5120, %s465, [#allocation12], 64, 64, 4
        $region56: #{tpu_custom_call.1} parent=11 // pred_fallthru
          _
        // Predicated region
        $region57: #{tpu_custom_call.1} parent=11 // pred_check
          %p471 = pneg %p311
        $region58: #{tpu_custom_call.1} parent=11 // pred_check_branch
          %473 = sbr.rel (%p471) target = $region60
        $region59: #{tpu_custom_call.1} parent=11 // pred_region
          _
        $region60: #{tpu_custom_call.1} parent=11 // pred_fallthru
          _
      $region12: #{tpu_custom_call.1} parent=5 // pred_fallthru
        _
      %p474 = scmp.lt.s32.totalorder %s33, 2
      // Predicated region
      $region61: #{tpu_custom_call.1} parent=5 // pred_check
        %p475 = pneg %p474
      $region62: #{tpu_custom_call.1} parent=5 // pred_check_branch
        %477 = sbr.rel (%p475) target = $region64
      $region63: #{tpu_custom_call.1} parent=5 // pred_region
        // Predicated region
        $region65: #{tpu_custom_call.1} parent=63 // pred_check
          %p478 = pneg %p53
        $region66: #{tpu_custom_call.1} parent=63 // pred_check_branch
          %480 = sbr.rel (%p478) target = $region68
        $region67: #{tpu_custom_call.1} parent=63 // pred_region
          %s481 = sand.u32 %s43, 1
          %s482 = scalar_lea.sflag [#allocation3], %s481
          %s483 = sand.u32 %s43, 1
          %s484 = smul.addr %s483, 8
          %s485 = scalar_lea.vmem [#allocation2], %s484
          %s486 = smul.u32 2, %s33
          %s488 = ssub.s32 128, 128
          %489 = vsyncadd %s482, %s488
          %s490 = smul.addr %s486, 64
          %s491 = scalar_lea.hbm %s0, %s490
          %s492 = sshll.u32 %s485, 4
          %s493 = int_to_ptr.vmem [resolvable:$true] %s492
          %498 = dma.hbm_to_vmem [thread:$0]  %s491, 128, %s493, %s482, 64, 64, 4
        $region68: #{tpu_custom_call.1} parent=63 // pred_fallthru
          _
      $region64: #{tpu_custom_call.1} parent=5 // pred_fallthru
        _
      %p499 = scmp.le.s32.totalorder 1, %s33
      %p500 = scmp.lt.s32.totalorder %s33, 3
      %p501 = pnand %p499, %p500
      %p502 = pneg %p501
      // Predicated region
      $region69: #{tpu_custom_call.1} parent=5 // pred_check
        _
      $region70: #{tpu_custom_call.1} parent=5 // pred_check_branch
        %504 = sbr.rel (%p501) target = $region72
      $region71: #{tpu_custom_call.1} parent=5 // pred_region
        %s505 = ssub.s32 %s33, 1
        %s506 = sand.u32 %s46, 1
        %s507 = scalar_lea.sflag [#allocation3], %s506
        %s508 = sand.u32 %s46, 1
        %s509 = smul.addr %s508, 8
        %s510 = scalar_lea.vmem [#allocation2], %s509
        // Predicated region
        $region73: #{tpu_custom_call.1} parent=71 // pred_check
          %p511 = pneg %p59
        $region74: #{tpu_custom_call.1} parent=71 // pred_check_branch
          %513 = sbr.rel (%p511) target = $region76
        $region75: #{tpu_custom_call.1} parent=71 // pred_region
          %514 = dma.done %s507, 128
        $region76: #{tpu_custom_call.1} parent=71 // pred_fallthru
          _
        // Predicated region
        $region77: #{tpu_custom_call.1} parent=71 // pred_check
          %p515 = pneg %p80
        $region78: #{tpu_custom_call.1} parent=71 // pred_check_branch
          %517 = sbr.rel (%p515) target = $region80
        $region79: #{tpu_custom_call.1} parent=71 // pred_region
          %518 = dma.done [#allocation6], 256
        $region80: #{tpu_custom_call.1} parent=71 // pred_fallthru
          _
        // Predicated region
        $region81: #{tpu_custom_call.1} parent=71 // pred_check
          %p519 = pneg %p122
        $region82: #{tpu_custom_call.1} parent=71 // pred_check_branch
          %521 = sbr.rel (%p519) target = $region84
        $region83: #{tpu_custom_call.1} parent=71 // pred_region
          %522 = dma.done [#allocation6], 1024
        $region84: #{tpu_custom_call.1} parent=71 // pred_fallthru
          _
        // Predicated region
        $region85: #{tpu_custom_call.1} parent=71 // pred_check
          %p523 = pneg %p164
        $region86: #{tpu_custom_call.1} parent=71 // pred_check_branch
          %525 = sbr.rel (%p523) target = $region88
        $region87: #{tpu_custom_call.1} parent=71 // pred_region
          %526 = dma.done [#allocation9], 1024
        $region88: #{tpu_custom_call.1} parent=71 // pred_fallthru
          _
        // Predicated region
        $region89: #{tpu_custom_call.1} parent=71 // pred_check
          %p527 = pneg %p206
        $region90: #{tpu_custom_call.1} parent=71 // pred_check_branch
          %529 = sbr.rel (%p527) target = $region92
        $region91: #{tpu_custom_call.1} parent=71 // pred_region
          %530 = dma.done [#allocation9], 1024
        $region92: #{tpu_custom_call.1} parent=71 // pred_fallthru
          _
        // Predicated region
        $region93: #{tpu_custom_call.1} parent=71 // pred_check
          %p531 = pneg %p248
        $region94: #{tpu_custom_call.1} parent=71 // pred_check_branch
          %533 = sbr.rel (%p531) target = $region96
        $region95: #{tpu_custom_call.1} parent=71 // pred_region
          %534 = dma.done [#allocation12], 5120
        $region96: #{tpu_custom_call.1} parent=71 // pred_fallthru
          _
        // Predicated region
        $region97: #{tpu_custom_call.1} parent=71 // pred_check
          %p535 = pneg %p290
        $region98: #{tpu_custom_call.1} parent=71 // pred_check_branch
          %537 = sbr.rel (%p535) target = $region100
        $region99: #{tpu_custom_call.1} parent=71 // pred_region
          %538 = dma.done [#allocation12], 5120
        $region100: #{tpu_custom_call.1} parent=71 // pred_fallthru
          _
        %s539 = sand.u32 %s46, 1
        %s540 = scalar_lea.sflag [#allocation3], %s539
        %s541 = sand.u32 %s46, 1
        %s542 = smul.addr %s541, 8
        %s543 = scalar_lea.vmem [#allocation2], %s542
        %p544 = pneg %p59
        %p545 = pneg %p56
        %p546 = pneg %p80
        %p547 = pneg %p77
        %p548 = pneg %p101
        %p549 = pneg %p98
        %p550 = pneg %p122
        %p551 = pneg %p119
        %p552 = pneg %p143
        %p553 = pneg %p140
        %p554 = pneg %p164
        %p555 = pneg %p161
        %p556 = pneg %p185
        %p557 = pneg %p182
        %p558 = pneg %p206
        %p559 = pneg %p203
        %p560 = pneg %p227
        %p561 = pneg %p224
        %p562 = pneg %p248
        %p563 = pneg %p245
        %p564 = pneg %p269
        %p565 = pneg %p266
        %p566 = pneg %p290
        %p567 = pneg %p287
        %p568 = pneg %p311
        %p569 = pneg %p308
        %p570 = pneg %p337
        %p571 = pneg %p334
        %s572 = sand.u32 %s324, 1
        %s573 = scalar_lea.sflag [#allocation4], %s572
        %s574 = sand.u32 %s324, 1
        %s575 = smul.addr %s574, 16
        %s576 = scalar_lea.vmem [#allocation14], %s575
        %p577 = pneg %p363
        %p578 = pneg %p360
        %s579 = sand.u32 %s350, 1
        %s580 = scalar_lea.sflag [#allocation16], %s579
        %s581 = sand.u32 %s350, 1
        %s582 = smul.addr %s581, 16
        %s583 = scalar_lea.vmem [#allocation15], %s582
        %s584 = smul.u32 2, %s38
        %s585 = smul.u32 2, %s38
        %s586 = smul.u32 2, %s38
        %v588 = vld [vmem:[%s510] sm:$0xf]
        %v589 = vld [vmem:[%s510 + $0x4] sm:$0xf]
        %v590 = vld [vmem:[#allocation8] sm:$0xff]
        %v591 = vld [vmem:[#allocation8 + $0x8] sm:$0xff]
        %v592 = vld [vmem:[#allocation8 + $0x10] sm:$0xff]
        %v593 = vld [vmem:[#allocation8 + $0x18] sm:$0xff]
        %v594 = vld [vmem:[#allocation8 + $0x20] sm:$0xff]
        %v595 = vld [vmem:[#allocation8 + $0x28] sm:$0xff]
        %v596 = vld [vmem:[#allocation8 + $0x30] sm:$0xff]
        %v597 = vld [vmem:[#allocation8 + $0x38] sm:$0xff]
        %v598 = vld [vmem:[%s6] sm:$0xf]
        %v600 = vlaneseq
        %v601 = vshrl.u32 %v600, 7
        %v602 = vsub.s32 0, %v601
        %v603 = vrot.slane %v598, %v602
        %v604 = vlaneseq
        %v605 = vshrl.u32 %v604, 7
        %v606 = vsub.s32 1, %v605
        %v607 = vrot.slane %v598, %v606
        %v608 = vlaneseq
        %v609 = vshrl.u32 %v608, 7
        %v610 = vsub.s32 2, %v609
        %v611 = vrot.slane %v598, %v610
        %v612 = vlaneseq
        %v613 = vshrl.u32 %v612, 7
        %v614 = vsub.s32 3, %v613
        %v615 = vrot.slane %v598, %v614
        %v622 = vunpack.c.l.b16 %v588
        %v623 = vunpack.c.l.b16 %v589
        %v624 = vpack.c.b16 %v623, %v622
        %v633 = vunpack.c.l.b16 %v590
        %v634 = vunpack.c.h.b16 %v590
        %v635 = vunpack.c.l.b16 %v591
        %v636 = vunpack.c.h.b16 %v591
        %v637 = vunpack.c.l.b16 %v592
        %v638 = vunpack.c.h.b16 %v592
        %v639 = vunpack.c.l.b16 %v593
        %v640 = vunpack.c.h.b16 %v593
        %v641 = vunpack.c.l.b16 %v594
        %v642 = vunpack.c.h.b16 %v594
        %v643 = vunpack.c.l.b16 %v595
        %v644 = vunpack.c.h.b16 %v595
        %v645 = vunpack.c.l.b16 %v596
        %v646 = vunpack.c.h.b16 %v596
        %v647 = vunpack.c.l.b16 %v597
        %v648 = vunpack.c.h.b16 %v597
        %v649 = vpack.c.b16 %v637, %v633
        %v650 = vpack.c.b16 %v638, %v634
        %v651 = vpack.c.b16 %v639, %v635
        %v652 = vpack.c.b16 %v640, %v636
        %v653 = vpack.c.b16 %v645, %v641
        %v654 = vpack.c.b16 %v646, %v642
        %v655 = vpack.c.b16 %v647, %v643
        %v656 = vpack.c.b16 %v648, %v644
        %vm665 = vcmask 261120
        %v667 = vsel %vm665, %v624, 0
        %669 = vmatprep.subr.bf16.mxu0 %v650
        %670 = vmatpush1.bf16.msra.mxu0 %v649
        %671 = vmatprep.subr.bf16.mxu0 %v654
        %672 = vmatpush1.bf16.msra.mxu0 %v653
        %673 = vmatprep.subr.bf16.mxu0 0
        %674 = vmatpush1.bf16.msra.mxu0 0
        %675 = vmatprep.subr.bf16.mxu0 0
        %676 = vmatpush1.bf16.msra.mxu0 0
        %677 = vmatprep.subr.bf16.mxu0 0
        %678 = vmatpush1.bf16.msra.mxu0 0
        %679 = vmatprep.subr.bf16.mxu0 0
        %680 = vmatpush1.bf16.msra.mxu0 0
        %681 = vmatprep.subr.bf16.mxu0 0
        %682 = vmatpush1.bf16.msra.mxu0 0
        %683 = vmatprep.subr.bf16.mxu0 0
        %684 = vmatpush1.bf16.msra.mxu0 0
        %685 = vmatprep.subr.bf16.mxu0 0
        %686 = vmatpush1.bf16.msra.mxu0 0
        %687 = vmatprep.subr.bf16.mxu0 0
        %688 = vmatpush1.bf16.msra.mxu0 0
        %689 = vmatprep.subr.bf16.mxu0 0
        %690 = vmatpush1.bf16.msra.mxu0 0
        %691 = vmatprep.subr.bf16.mxu0 0
        %692 = vmatpush1.bf16.msra.mxu0 0
        %693 = vmatprep.subr.bf16.mxu0 0
        %694 = vmatpush1.bf16.msra.mxu0 0
        %695 = vmatprep.subr.bf16.mxu0 0
        %696 = vmatpush1.bf16.msra.mxu0 0
        %697 = vmatprep.subr.bf16.mxu0 0
        %698 = vmatpush1.bf16.msra.mxu0 0
        %699 = vmatprep.subr.bf16.mxu0 0
        %700 = vmatpush1.bf16.msra.mxu0 0
        %701 = vmatprep.mubr.bf16.mxu0 0
        %702 = vmatmul.mubr.bf16.gmra.mrb[0].mxu0 %v667
        %v703 = vpop.f32.mrb[0].mxu0
        %v704 = vadd.f32 %v603, %v703
        %v705 = vpop.f32.mrb[0].mxu0
        %v706 = vadd.f32 %v607, %v705
        %v707 = vpop.f32.mrb[0].mxu0
        %v708 = vadd.f32 %v603, %v707
        %v709 = vpop.f32.mrb[0].mxu0
        %v710 = vadd.f32 %v607, %v709
        %711 = vdwg.mxu0
        %712 = vmatprep.subr.bf16.mxu0 %v652
        %713 = vmatpush1.bf16.msra.mxu0 %v651
        %714 = vmatprep.subr.bf16.mxu0 %v656
        %715 = vmatpush1.bf16.msra.mxu0 %v655
        %716 = vmatprep.subr.bf16.mxu0 0
        %717 = vmatpush1.bf16.msra.mxu0 0
        %718 = vmatprep.subr.bf16.mxu0 0
        %719 = vmatpush1.bf16.msra.mxu0 0
        %720 = vmatprep.subr.bf16.mxu0 0
        %721 = vmatpush1.bf16.msra.mxu0 0
        %722 = vmatprep.subr.bf16.mxu0 0
        %723 = vmatpush1.bf16.msra.mxu0 0
        %724 = vmatprep.subr.bf16.mxu0 0
        %725 = vmatpush1.bf16.msra.mxu0 0
        %726 = vmatprep.subr.bf16.mxu0 0
        %727 = vmatpush1.bf16.msra.mxu0 0
        %728 = vmatprep.subr.bf16.mxu0 0
        %729 = vmatpush1.bf16.msra.mxu0 0
        %730 = vmatprep.subr.bf16.mxu0 0
        %731 = vmatpush1.bf16.msra.mxu0 0
        %732 = vmatprep.subr.bf16.mxu0 0
        %733 = vmatpush1.bf16.msra.mxu0 0
        %734 = vmatprep.subr.bf16.mxu0 0
        %735 = vmatpush1.bf16.msra.mxu0 0
        %736 = vmatprep.subr.bf16.mxu0 0
        %737 = vmatpush1.bf16.msra.mxu0 0
        %738 = vmatprep.subr.bf16.mxu0 0
        %739 = vmatpush1.bf16.msra.mxu0 0
        %740 = vmatprep.subr.bf16.mxu0 0
        %741 = vmatpush1.bf16.msra.mxu0 0
        %742 = vmatprep.subr.bf16.mxu0 0
        %743 = vmatpush1.bf16.msra.mxu0 0
        %744 = vmatprep.mubr.bf16.mxu0 0
        %745 = vmatmul.mubr.bf16.gmra.mrb[0].mxu0 %v667
        %v746 = vpop.f32.mrb[0].mxu0
        %v747 = vadd.f32 %v611, %v746
        %v748 = vpop.f32.mrb[0].mxu0
        %v749 = vadd.f32 %v615, %v748
        %v750 = vpop.f32.mrb[0].mxu0
        %v751 = vadd.f32 %v611, %v750
        %v752 = vpop.f32.mrb[0].mxu0
        %v753 = vadd.f32 %v615, %v752
        %754 = vdwg.mxu0
        %v755 = vld [vmem:[#allocation7] sm:$0xf]
        %v756 = vld [vmem:[#allocation7 + $0x4] sm:$0xf]
        %v757 = vld [vmem:[#allocation7 + $0x8] sm:$0xf]
        %v758 = vld [vmem:[#allocation7 + $0xc] sm:$0xf]
        %v759 = vld [vmem:[#allocation7 + $0x10] sm:$0xf]
        %v760 = vld [vmem:[#allocation7 + $0x14] sm:$0xf]
        %v761 = vld [vmem:[#allocation7 + $0x18] sm:$0xf]
        %v762 = vld [vmem:[#allocation7 + $0x1c] sm:$0xf]
        %v763 = vld [vmem:[#allocation7 + $0x20] sm:$0xf]
        %v764 = vld [vmem:[#allocation7 + $0x24] sm:$0xf]
        %v765 = vld [vmem:[#allocation7 + $0x28] sm:$0xf]
        %v766 = vld [vmem:[#allocation7 + $0x2c] sm:$0xf]
        %v767 = vld [vmem:[#allocation7 + $0x30] sm:$0xf]
        %v768 = vld [vmem:[#allocation7 + $0x34] sm:$0xf]
        %v769 = vld [vmem:[#allocation7 + $0x38] sm:$0xf]
        %v770 = vld [vmem:[#allocation7 + $0x3c] sm:$0xf]
        %v771 = vld [vmem:[%s4] sm:$0x1]
        %v772 = vld [vmem:[#allocation5] sm:$0xf]
        %v773 = vld [vmem:[#allocation5 + $0x4] sm:$0xf]
        %v774 = vld [vmem:[#allocation5 + $0x8] sm:$0xf]
        %v775 = vld [vmem:[#allocation5 + $0xc] sm:$0xf]
        %v776 = vld [vmem:[%s2] sm:$0x1]
        %v778 = vlaneseq
        %v779 = vshrl.u32 %v778, 7
        %v780 = vsub.s32 0, %v779
        %v781 = vrot.slane %v776, %v780
        %v787 = vunpack.c.l.b16 %v772
        %v788 = vunpack.c.l.b16 %v773
        %v789 = vunpack.c.l.b16 %v774
        %v790 = vunpack.c.l.b16 %v775
        %v791 = vpack.c.b16 %v788, %v787
        %v792 = vpack.c.b16 %v790, %v789
        %795 = vmatprep.subr.bf16.mxu0 0
        %796 = vmatpush1.bf16.msra.mxu0 %v791
        %797 = vmatprep.subr.bf16.mxu0 0
        %798 = vmatpush1.bf16.msra.mxu0 %v792
        %799 = vmatprep.subr.bf16.mxu0 0
        %800 = vmatpush1.bf16.msra.mxu0 0
        %801 = vmatprep.subr.bf16.mxu0 0
        %802 = vmatpush1.bf16.msra.mxu0 0
        %803 = vmatprep.subr.bf16.mxu0 0
        %804 = vmatpush1.bf16.msra.mxu0 0
        %805 = vmatprep.subr.bf16.mxu0 0
        %806 = vmatpush1.bf16.msra.mxu0 0
        %807 = vmatprep.subr.bf16.mxu0 0
        %808 = vmatpush1.bf16.msra.mxu0 0
        %809 = vmatprep.subr.bf16.mxu0 0
        %810 = vmatpush1.bf16.msra.mxu0 0
        %811 = vmatprep.subr.bf16.mxu0 0
        %812 = vmatpush1.bf16.msra.mxu0 0
        %813 = vmatprep.subr.bf16.mxu0 0
        %814 = vmatpush1.bf16.msra.mxu0 0
        %815 = vmatprep.subr.bf16.mxu0 0
        %816 = vmatpush1.bf16.msra.mxu0 0
        %817 = vmatprep.subr.bf16.mxu0 0
        %818 = vmatpush1.bf16.msra.mxu0 0
        %819 = vmatprep.subr.bf16.mxu0 0
        %820 = vmatpush1.bf16.msra.mxu0 0
        %821 = vmatprep.subr.bf16.mxu0 0
        %822 = vmatpush1.bf16.msra.mxu0 0
        %823 = vmatprep.subr.bf16.mxu0 0
        %824 = vmatpush1.bf16.msra.mxu0 0
        %825 = vmatprep.subr.bf16.mxu0 0
        %826 = vmatpush1.bf16.msra.mxu0 0
        %827 = vmatprep.mubr.bf16.mxu0 0
        %828 = vmatmul.mubr.bf16.gmra.mrb[0].mxu0 %v667
        %v829 = vpop.f32.mrb[0].mxu0
        %v830 = vadd.f32 %v781, %v829
        %v831 = vpop.f32.mrb[0].mxu0
        %v832 = vpop.f32.mrb[0].mxu0
        %v833 = vadd.f32 %v781, %v832
        %v834 = vpop.f32.mrb[0].mxu0
        %835 = vdwg.mxu0
        %v836 = vmax.f32 %v830, 0.0
        %v837 = vmax.f32 %v833, 0.0
        %v838 = vpack.c.bf16 %v837, %v836
        %v840 = vlaneseq
        %v841 = vshrl.u32 %v840, 7
        %v842 = vsub.s32 0, %v841
        %v843 = vrot.slane %v771, %v842
        %v861 = vunpack.c.l.b16 %v755
        %v862 = vunpack.c.l.b16 %v756
        %v863 = vunpack.c.l.b16 %v757
        %v864 = vunpack.c.l.b16 %v758
        %v865 = vunpack.c.l.b16 %v759
        %v866 = vunpack.c.l.b16 %v760
        %v867 = vunpack.c.l.b16 %v761
        %v868 = vunpack.c.l.b16 %v762
        %v869 = vunpack.c.l.b16 %v763
        %v870 = vunpack.c.l.b16 %v764
        %v871 = vunpack.c.l.b16 %v765
        %v872 = vunpack.c.l.b16 %v766
        %v873 = vunpack.c.l.b16 %v767
        %v874 = vunpack.c.l.b16 %v768
        %v875 = vunpack.c.l.b16 %v769
        %v876 = vunpack.c.l.b16 %v770
        %v877 = vpack.c.b16 %v862, %v861
        %v878 = vpack.c.b16 %v864, %v863
        %v879 = vpack.c.b16 %v866, %v865
        %v880 = vpack.c.b16 %v868, %v867
        %v881 = vpack.c.b16 %v870, %v869
        %v882 = vpack.c.b16 %v872, %v871
        %v883 = vpack.c.b16 %v874, %v873
        %v884 = vpack.c.b16 %v876, %v875
        %893 = vmatprep.subr.bf16.mxu0 0
        %894 = vmatpush1.bf16.msra.mxu0 %v877
        %895 = vmatprep.subr.bf16.mxu0 0
        %896 = vmatpush1.bf16.msra.mxu0 %v878
        %897 = vmatprep.subr.bf16.mxu0 0
        %898 = vmatpush1.bf16.msra.mxu0 %v879
        %899 = vmatprep.subr.bf16.mxu0 0
        %900 = vmatpush1.bf16.msra.mxu0 %v880
        %901 = vmatprep.subr.bf16.mxu0 0
        %902 = vmatpush1.bf16.msra.mxu0 %v881
        %903 = vmatprep.subr.bf16.mxu0 0
        %904 = vmatpush1.bf16.msra.mxu0 %v882
        %905 = vmatprep.subr.bf16.mxu0 0
        %906 = vmatpush1.bf16.msra.mxu0 %v883
        %907 = vmatprep.subr.bf16.mxu0 0
        %908 = vmatpush1.bf16.msra.mxu0 %v884
        %909 = vmatprep.subr.bf16.mxu0 0
        %910 = vmatpush1.bf16.msra.mxu0 0
        %911 = vmatprep.subr.bf16.mxu0 0
        %912 = vmatpush1.bf16.msra.mxu0 0
        %913 = vmatprep.subr.bf16.mxu0 0
        %914 = vmatpush1.bf16.msra.mxu0 0
        %915 = vmatprep.subr.bf16.mxu0 0
        %916 = vmatpush1.bf16.msra.mxu0 0
        %917 = vmatprep.subr.bf16.mxu0 0
        %918 = vmatpush1.bf16.msra.mxu0 0
        %919 = vmatprep.subr.bf16.mxu0 0
        %920 = vmatpush1.bf16.msra.mxu0 0
        %921 = vmatprep.subr.bf16.mxu0 0
        %922 = vmatpush1.bf16.msra.mxu0 0
        %923 = vmatprep.subr.bf16.mxu0 0
        %924 = vmatpush1.bf16.msra.mxu0 0
        %925 = vmatprep.mubr.bf16.mxu0 0
        %926 = vmatmul.mubr.bf16.gmra.mrb[0].mxu0 %v838
        %v927 = vpop.f32.mrb[0].mxu0
        %v928 = vadd.f32 %v843, %v927
        %v929 = vpop.f32.mrb[0].mxu0
        %v930 = vpop.f32.mrb[0].mxu0
        %v931 = vadd.f32 %v843, %v930
        %v932 = vpop.f32.mrb[0].mxu0
        %933 = vdwg.mxu0
        %v934 = vadd.f32 %v928, %v704
        %v935 = vadd.f32 %v931, %v708
        %v936 = vmax.f32 %v934, 0.0
        %v937 = vmax.f32 %v935, 0.0
        %v938 = vpack.c.bf16 %v937, %v936
        %939 = vmatprep.subr.bf16.mxu0 0
        %940 = vmatpush1.bf16.msra.mxu0 %v877
        %941 = vmatprep.subr.bf16.mxu0 0
        %942 = vmatpush1.bf16.msra.mxu0 %v878
        %943 = vmatprep.subr.bf16.mxu0 0
        %944 = vmatpush1.bf16.msra.mxu0 %v879
        %945 = vmatprep.subr.bf16.mxu0 0
        %946 = vmatpush1.bf16.msra.mxu0 %v880
        %947 = vmatprep.subr.bf16.mxu0 0
        %948 = vmatpush1.bf16.msra.mxu0 %v881
        %949 = vmatprep.subr.bf16.mxu0 0
        %950 = vmatpush1.bf16.msra.mxu0 %v882
        %951 = vmatprep.subr.bf16.mxu0 0
        %952 = vmatpush1.bf16.msra.mxu0 %v883
        %953 = vmatprep.subr.bf16.mxu0 0
        %954 = vmatpush1.bf16.msra.mxu0 %v884
        %955 = vmatprep.subr.bf16.mxu0 0
        %956 = vmatpush1.bf16.msra.mxu0 0
        %957 = vmatprep.subr.bf16.mxu0 0
        %958 = vmatpush1.bf16.msra.mxu0 0
        %959 = vmatprep.subr.bf16.mxu0 0
        %960 = vmatpush1.bf16.msra.mxu0 0
        %961 = vmatprep.subr.bf16.mxu0 0
        %962 = vmatpush1.bf16.msra.mxu0 0
        %963 = vmatprep.subr.bf16.mxu0 0
        %964 = vmatpush1.bf16.msra.mxu0 0
        %965 = vmatprep.subr.bf16.mxu0 0
        %966 = vmatpush1.bf16.msra.mxu0 0
        %967 = vmatprep.subr.bf16.mxu0 0
        %968 = vmatpush1.bf16.msra.mxu0 0
        %969 = vmatprep.subr.bf16.mxu0 0
        %970 = vmatpush1.bf16.msra.mxu0 0
        %971 = vmatprep.mubr.bf16.mxu0 0
        %972 = vmatmul.mubr.bf16.gmra.mrb[0].mxu0 %v938
        %v973 = vpop.f32.mrb[0].mxu0
        %v974 = vadd.f32 %v843, %v973
        %v975 = vpop.f32.mrb[0].mxu0
        %v976 = vpop.f32.mrb[0].mxu0
        %v977 = vadd.f32 %v843, %v976
        %v978 = vpop.f32.mrb[0].mxu0
        %979 = vdwg.mxu0
        %v980 = vadd.f32 %v974, %v706
        %v981 = vadd.f32 %v977, %v710
        %v982 = vmax.f32 %v980, 0.0
        %v983 = vmax.f32 %v981, 0.0
        %v984 = vpack.c.bf16 %v983, %v982
        %985 = vmatprep.subr.bf16.mxu0 0
        %986 = vmatpush1.bf16.msra.mxu0 %v877
        %987 = vmatprep.subr.bf16.mxu0 0
        %988 = vmatpush1.bf16.msra.mxu0 %v878
        %989 = vmatprep.subr.bf16.mxu0 0
        %990 = vmatpush1.bf16.msra.mxu0 %v879
        %991 = vmatprep.subr.bf16.mxu0 0
        %992 = vmatpush1.bf16.msra.mxu0 %v880
        %993 = vmatprep.subr.bf16.mxu0 0
        %994 = vmatpush1.bf16.msra.mxu0 %v881
        %995 = vmatprep.subr.bf16.mxu0 0
        %996 = vmatpush1.bf16.msra.mxu0 %v882
        %997 = vmatprep.subr.bf16.mxu0 0
        %998 = vmatpush1.bf16.msra.mxu0 %v883
        %999 = vmatprep.subr.bf16.mxu0 0
        %1000 = vmatpush1.bf16.msra.mxu0 %v884
        %1001 = vmatprep.subr.bf16.mxu0 0
        %1002 = vmatpush1.bf16.msra.mxu0 0
        %1003 = vmatprep.subr.bf16.mxu0 0
        %1004 = vmatpush1.bf16.msra.mxu0 0
        %1005 = vmatprep.subr.bf16.mxu0 0
        %1006 = vmatpush1.bf16.msra.mxu0 0
        %1007 = vmatprep.subr.bf16.mxu0 0
        %1008 = vmatpush1.bf16.msra.mxu0 0
        %1009 = vmatprep.subr.bf16.mxu0 0
        %1010 = vmatpush1.bf16.msra.mxu0 0
        %1011 = vmatprep.subr.bf16.mxu0 0
        %1012 = vmatpush1.bf16.msra.mxu0 0
        %1013 = vmatprep.subr.bf16.mxu0 0
        %1014 = vmatpush1.bf16.msra.mxu0 0
        %1015 = vmatprep.subr.bf16.mxu0 0
        %1016 = vmatpush1.bf16.msra.mxu0 0
        %1017 = vmatprep.mubr.bf16.mxu0 0
        %1018 = vmatmul.mubr.bf16.gmra.mrb[0].mxu0 %v984
        %v1019 = vpop.f32.mrb[0].mxu0
        %v1020 = vadd.f32 %v843, %v1019
        %v1021 = vpop.f32.mrb[0].mxu0
        %v1022 = vpop.f32.mrb[0].mxu0
        %v1023 = vadd.f32 %v843, %v1022
        %v1024 = vpop.f32.mrb[0].mxu0
        %1025 = vdwg.mxu0
        %v1026 = vadd.f32 %v1020, %v747
        %v1027 = vadd.f32 %v1023, %v751
        %v1028 = vmax.f32 %v1026, 0.0
        %v1029 = vmax.f32 %v1027, 0.0
        %v1030 = vpack.c.bf16 %v1029, %v1028
        %1031 = vmatprep.subr.bf16.mxu0 0
        %1032 = vmatpush1.bf16.msra.mxu0 %v877
        %1033 = vmatprep.subr.bf16.mxu0 0
        %1034 = vmatpush1.bf16.msra.mxu0 %v878
        %1035 = vmatprep.subr.bf16.mxu0 0
        %1036 = vmatpush1.bf16.msra.mxu0 %v879
        %1037 = vmatprep.subr.bf16.mxu0 0
        %1038 = vmatpush1.bf16.msra.mxu0 %v880
        %1039 = vmatprep.subr.bf16.mxu0 0
        %1040 = vmatpush1.bf16.msra.mxu0 %v881
        %1041 = vmatprep.subr.bf16.mxu0 0
        %1042 = vmatpush1.bf16.msra.mxu0 %v882
        %1043 = vmatprep.subr.bf16.mxu0 0
        %1044 = vmatpush1.bf16.msra.mxu0 %v883
        %1045 = vmatprep.subr.bf16.mxu0 0
        %1046 = vmatpush1.bf16.msra.mxu0 %v884
        %1047 = vmatprep.subr.bf16.mxu0 0
        %1048 = vmatpush1.bf16.msra.mxu0 0
        %1049 = vmatprep.subr.bf16.mxu0 0
        %1050 = vmatpush1.bf16.msra.mxu0 0
        %1051 = vmatprep.subr.bf16.mxu0 0
        %1052 = vmatpush1.bf16.msra.mxu0 0
        %1053 = vmatprep.subr.bf16.mxu0 0
        %1054 = vmatpush1.bf16.msra.mxu0 0
        %1055 = vmatprep.subr.bf16.mxu0 0
        %1056 = vmatpush1.bf16.msra.mxu0 0
        %1057 = vmatprep.subr.bf16.mxu0 0
        %1058 = vmatpush1.bf16.msra.mxu0 0
        %1059 = vmatprep.subr.bf16.mxu0 0
        %1060 = vmatpush1.bf16.msra.mxu0 0
        %1061 = vmatprep.subr.bf16.mxu0 0
        %1062 = vmatpush1.bf16.msra.mxu0 0
        %1063 = vmatprep.mubr.bf16.mxu0 0
        %1064 = vmatmul.mubr.bf16.gmra.mrb[0].mxu0 %v1030
        %v1065 = vpop.f32.mrb[0].mxu0
        %v1066 = vadd.f32 %v843, %v1065
        %v1067 = vpop.f32.mrb[0].mxu0
        %v1068 = vpop.f32.mrb[0].mxu0
        %v1069 = vadd.f32 %v843, %v1068
        %v1070 = vpop.f32.mrb[0].mxu0
        %1071 = vdwg.mxu0
        %v1072 = vadd.f32 %v1066, %v749
        %v1073 = vadd.f32 %v1069, %v753
        %v1074 = vmax.f32 %v1072, 0.0
        %v1075 = vmax.f32 %v1073, 0.0
        %v1076 = vld [vmem:[#allocation10] sm:$0xf]
        %v1077 = vld [vmem:[#allocation10 + $0x4] sm:$0xf]
        %v1078 = vld [vmem:[#allocation10 + $0x8] sm:$0xf]
        %v1079 = vld [vmem:[#allocation10 + $0xc] sm:$0xf]
        %v1080 = vld [vmem:[#allocation10 + $0x10] sm:$0xf]
        %v1081 = vld [vmem:[#allocation10 + $0x14] sm:$0xf]
        %v1082 = vld [vmem:[#allocation10 + $0x18] sm:$0xf]
        %v1083 = vld [vmem:[#allocation10 + $0x1c] sm:$0xf]
        %v1084 = vld [vmem:[#allocation10 + $0x20] sm:$0xf]
        %v1085 = vld [vmem:[#allocation10 + $0x24] sm:$0xf]
        %v1086 = vld [vmem:[#allocation10 + $0x28] sm:$0xf]
        %v1087 = vld [vmem:[#allocation10 + $0x2c] sm:$0xf]
        %v1088 = vld [vmem:[#allocation10 + $0x30] sm:$0xf]
        %v1089 = vld [vmem:[#allocation10 + $0x34] sm:$0xf]
        %v1090 = vld [vmem:[#allocation10 + $0x38] sm:$0xf]
        %v1091 = vld [vmem:[#allocation10 + $0x3c] sm:$0xf]
        %v1092 = vpack.c.bf16 %v1075, %v1074
        %v1093 = vld [vmem:[%s8] sm:$0x1]
        %v1095 = vlaneseq
        %v1096 = vshrl.u32 %v1095, 7
        %v1097 = vsub.s32 0, %v1096
        %v1098 = vrot.slane %v1093, %v1097
        %v1116 = vunpack.c.l.b16 %v1076
        %v1117 = vunpack.c.l.b16 %v1077
        %v1118 = vunpack.c.l.b16 %v1078
        %v1119 = vunpack.c.l.b16 %v1079
        %v1120 = vunpack.c.l.b16 %v1080
        %v1121 = vunpack.c.l.b16 %v1081
        %v1122 = vunpack.c.l.b16 %v1082
        %v1123 = vunpack.c.l.b16 %v1083
        %v1124 = vunpack.c.l.b16 %v1084
        %v1125 = vunpack.c.l.b16 %v1085
        %v1126 = vunpack.c.l.b16 %v1086
        %v1127 = vunpack.c.l.b16 %v1087
        %v1128 = vunpack.c.l.b16 %v1088
        %v1129 = vunpack.c.l.b16 %v1089
        %v1130 = vunpack.c.l.b16 %v1090
        %v1131 = vunpack.c.l.b16 %v1091
        %v1132 = vpack.c.b16 %v1117, %v1116
        %v1133 = vpack.c.b16 %v1119, %v1118
        %v1134 = vpack.c.b16 %v1121, %v1120
        %v1135 = vpack.c.b16 %v1123, %v1122
        %v1136 = vpack.c.b16 %v1125, %v1124
        %v1137 = vpack.c.b16 %v1127, %v1126
        %v1138 = vpack.c.b16 %v1129, %v1128
        %v1139 = vpack.c.b16 %v1131, %v1130
        %1148 = vmatprep.subr.bf16.mxu0 0
        %1149 = vmatpush1.bf16.msra.mxu0 %v1132
        %1150 = vmatprep.subr.bf16.mxu0 0
        %1151 = vmatpush1.bf16.msra.mxu0 %v1133
        %1152 = vmatprep.subr.bf16.mxu0 0
        %1153 = vmatpush1.bf16.msra.mxu0 %v1134
        %1154 = vmatprep.subr.bf16.mxu0 0
        %1155 = vmatpush1.bf16.msra.mxu0 %v1135
        %1156 = vmatprep.subr.bf16.mxu0 0
        %1157 = vmatpush1.bf16.msra.mxu0 %v1136
        %1158 = vmatprep.subr.bf16.mxu0 0
        %1159 = vmatpush1.bf16.msra.mxu0 %v1137
        %1160 = vmatprep.subr.bf16.mxu0 0
        %1161 = vmatpush1.bf16.msra.mxu0 %v1138
        %1162 = vmatprep.subr.bf16.mxu0 0
        %1163 = vmatpush1.bf16.msra.mxu0 %v1139
        %1164 = vmatprep.subr.bf16.mxu0 0
        %1165 = vmatpush1.bf16.msra.mxu0 0
        %1166 = vmatprep.subr.bf16.mxu0 0
        %1167 = vmatpush1.bf16.msra.mxu0 0
        %1168 = vmatprep.subr.bf16.mxu0 0
        %1169 = vmatpush1.bf16.msra.mxu0 0
        %1170 = vmatprep.subr.bf16.mxu0 0
        %1171 = vmatpush1.bf16.msra.mxu0 0
        %1172 = vmatprep.subr.bf16.mxu0 0
        %1173 = vmatpush1.bf16.msra.mxu0 0
        %1174 = vmatprep.subr.bf16.mxu0 0
        %1175 = vmatpush1.bf16.msra.mxu0 0
        %1176 = vmatprep.subr.bf16.mxu0 0
        %1177 = vmatpush1.bf16.msra.mxu0 0
        %1178 = vmatprep.subr.bf16.mxu0 0
        %1179 = vmatpush1.bf16.msra.mxu0 0
        %1180 = vmatprep.mubr.bf16.mxu0 0
        %1181 = vmatmul.mubr.bf16.gmra.mrb[0].mxu0 %v1092
        %v1182 = vpop.f32.mrb[0].mxu0
        %v1183 = vadd.f32 %v1098, %v1182
        %v1184 = vpop.f32.mrb[0].mxu0
        %v1185 = vpop.f32.mrb[0].mxu0
        %v1186 = vadd.f32 %v1098, %v1185
        %v1187 = vpop.f32.mrb[0].mxu0
        %1188 = vdwg.mxu0
        %v1189 = vsub.f32 0.0, %v1183
        %v1190 = vsub.f32 0.0, %v1186
        %v1191 = vmul.f32 %v1189, 1.442695
        %v1192 = vpow.pop %v1191
        %v1193 = vmul.f32 %v1190, 1.442695
        %v1194 = vpow.pop %v1193
        %v1195 = vadd.f32 %v1192, 1.0
        %v1196 = vadd.f32 %v1194, 1.0
        %v1197 = vrcp.pop %v1195
        %v1198 = vmul.f32 1.0, %v1197
        %v1199 = vrcp.pop %v1196
        %v1200 = vmul.f32 1.0, %v1199
        %v1201 = vld [vmem:[#allocation11] sm:$0xf]
        %v1202 = vld [vmem:[#allocation11 + $0x4] sm:$0xf]
        %v1203 = vld [vmem:[#allocation11 + $0x8] sm:$0xf]
        %v1204 = vld [vmem:[#allocation11 + $0xc] sm:$0xf]
        %v1205 = vld [vmem:[#allocation11 + $0x10] sm:$0xf]
        %v1206 = vld [vmem:[#allocation11 + $0x14] sm:$0xf]
        %v1207 = vld [vmem:[#allocation11 + $0x18] sm:$0xf]
        %v1208 = vld [vmem:[#allocation11 + $0x1c] sm:$0xf]
        %v1209 = vld [vmem:[#allocation11 + $0x20] sm:$0xf]
        %v1210 = vld [vmem:[#allocation11 + $0x24] sm:$0xf]
        %v1211 = vld [vmem:[#allocation11 + $0x28] sm:$0xf]
        %v1212 = vld [vmem:[#allocation11 + $0x2c] sm:$0xf]
        %v1213 = vld [vmem:[#allocation11 + $0x30] sm:$0xf]
        %v1214 = vld [vmem:[#allocation11 + $0x34] sm:$0xf]
        %v1215 = vld [vmem:[#allocation11 + $0x38] sm:$0xf]
        %v1216 = vld [vmem:[#allocation11 + $0x3c] sm:$0xf]
        %v1217 = vld [vmem:[%s10] sm:$0x1]
        %v1219 = vlaneseq
        %v1220 = vshrl.u32 %v1219, 7
        %v1221 = vsub.s32 0, %v1220
        %v1222 = vrot.slane %v1217, %v1221
        %v1240 = vunpack.c.l.b16 %v1201
        %v1241 = vunpack.c.l.b16 %v1202
        %v1242 = vunpack.c.l.b16 %v1203
        %v1243 = vunpack.c.l.b16 %v1204
        %v1244 = vunpack.c.l.b16 %v1205
        %v1245 = vunpack.c.l.b16 %v1206
        %v1246 = vunpack.c.l.b16 %v1207
        %v1247 = vunpack.c.l.b16 %v1208
        %v1248 = vunpack.c.l.b16 %v1209
        %v1249 = vunpack.c.l.b16 %v1210
        %v1250 = vunpack.c.l.b16 %v1211
        %v1251 = vunpack.c.l.b16 %v1212
        %v1252 = vunpack.c.l.b16 %v1213
        %v1253 = vunpack.c.l.b16 %v1214
        %v1254 = vunpack.c.l.b16 %v1215
        %v1255 = vunpack.c.l.b16 %v1216
        %v1256 = vpack.c.b16 %v1241, %v1240
        %v1257 = vpack.c.b16 %v1243, %v1242
        %v1258 = vpack.c.b16 %v1245, %v1244
        %v1259 = vpack.c.b16 %v1247, %v1246
        %v1260 = vpack.c.b16 %v1249, %v1248
        %v1261 = vpack.c.b16 %v1251, %v1250
        %v1262 = vpack.c.b16 %v1253, %v1252
        %v1263 = vpack.c.b16 %v1255, %v1254
        %1272 = vmatprep.subr.bf16.mxu0 0
        %1273 = vmatpush1.bf16.msra.mxu0 %v1256
        %1274 = vmatprep.subr.bf16.mxu0 0
        %1275 = vmatpush1.bf16.msra.mxu0 %v1257
        %1276 = vmatprep.subr.bf16.mxu0 0
        %1277 = vmatpush1.bf16.msra.mxu0 %v1258
        %1278 = vmatprep.subr.bf16.mxu0 0
        %1279 = vmatpush1.bf16.msra.mxu0 %v1259
        %1280 = vmatprep.subr.bf16.mxu0 0
        %1281 = vmatpush1.bf16.msra.mxu0 %v1260
        %1282 = vmatprep.subr.bf16.mxu0 0
        %1283 = vmatpush1.bf16.msra.mxu0 %v1261
        %1284 = vmatprep.subr.bf16.mxu0 0
        %1285 = vmatpush1.bf16.msra.mxu0 %v1262
        %1286 = vmatprep.subr.bf16.mxu0 0
        %1287 = vmatpush1.bf16.msra.mxu0 %v1263
        %1288 = vmatprep.subr.bf16.mxu0 0
        %1289 = vmatpush1.bf16.msra.mxu0 0
        %1290 = vmatprep.subr.bf16.mxu0 0
        %1291 = vmatpush1.bf16.msra.mxu0 0
        %1292 = vmatprep.subr.bf16.mxu0 0
        %1293 = vmatpush1.bf16.msra.mxu0 0
        %1294 = vmatprep.subr.bf16.mxu0 0
        %1295 = vmatpush1.bf16.msra.mxu0 0
        %1296 = vmatprep.subr.bf16.mxu0 0
        %1297 = vmatpush1.bf16.msra.mxu0 0
        %1298 = vmatprep.subr.bf16.mxu0 0
        %1299 = vmatpush1.bf16.msra.mxu0 0
        %1300 = vmatprep.subr.bf16.mxu0 0
        %1301 = vmatpush1.bf16.msra.mxu0 0
        %1302 = vmatprep.subr.bf16.mxu0 0
        %1303 = vmatpush1.bf16.msra.mxu0 0
        %1304 = vmatprep.mubr.bf16.mxu0 0
        %1305 = vmatmul.mubr.bf16.gmra.mrb[0].mxu0 %v838
        %v1306 = vpop.f32.mrb[0].mxu0
        %v1307 = vadd.f32 %v1222, %v1306
        %v1308 = vpop.f32.mrb[0].mxu0
        %v1309 = vpop.f32.mrb[0].mxu0
        %v1310 = vadd.f32 %v1222, %v1309
        %v1311 = vpop.f32.mrb[0].mxu0
        %1312 = vdwg.mxu0
        %v1313 = vmax.f32 %v1307, 0.0
        %v1314 = vmax.f32 %v1310, 0.0
        %v1315 = vld [vmem:[#allocation13] sm:$0xf]
        %v1316 = vld [vmem:[#allocation13 + $0x4] sm:$0xf]
        %v1317 = vld [vmem:[#allocation13 + $0x8] sm:$0xf]
        %v1318 = vld [vmem:[#allocation13 + $0xc] sm:$0xf]
        %v1319 = vld [vmem:[#allocation13 + $0x10] sm:$0xf]
        %v1320 = vld [vmem:[#allocation13 + $0x14] sm:$0xf]
        %v1321 = vld [vmem:[#allocation13 + $0x18] sm:$0xf]
        %v1322 = vld [vmem:[#allocation13 + $0x1c] sm:$0xf]
        %v1323 = vld [vmem:[#allocation13 + $0x20] sm:$0xf]
        %v1324 = vld [vmem:[#allocation13 + $0x24] sm:$0xf]
        %v1325 = vld [vmem:[#allocation13 + $0x28] sm:$0xf]
        %v1326 = vld [vmem:[#allocation13 + $0x2c] sm:$0xf]
        %v1327 = vld [vmem:[#allocation13 + $0x30] sm:$0xf]
        %v1328 = vld [vmem:[#allocation13 + $0x34] sm:$0xf]
        %v1329 = vld [vmem:[#allocation13 + $0x38] sm:$0xf]
        %v1330 = vld [vmem:[#allocation13 + $0x3c] sm:$0xf]
        %v1331 = vpack.c.bf16 %v1314, %v1313
        %s1332 = scalar_lea.vmem [#allocation11], 64
        %v1333 = vld [vmem:[%s1332] sm:$0xf]
        %v1334 = vld [vmem:[%s1332 + $0x4] sm:$0xf]
        %v1335 = vld [vmem:[%s1332 + $0x8] sm:$0xf]
        %v1336 = vld [vmem:[%s1332 + $0xc] sm:$0xf]
        %v1337 = vld [vmem:[%s1332 + $0x10] sm:$0xf]
        %v1338 = vld [vmem:[%s1332 + $0x14] sm:$0xf]
        %v1339 = vld [vmem:[%s1332 + $0x18] sm:$0xf]
        %v1340 = vld [vmem:[%s1332 + $0x1c] sm:$0xf]
        %v1341 = vld [vmem:[%s1332 + $0x20] sm:$0xf]
        %v1342 = vld [vmem:[%s1332 + $0x24] sm:$0xf]
        %v1343 = vld [vmem:[%s1332 + $0x28] sm:$0xf]
        %v1344 = vld [vmem:[%s1332 + $0x2c] sm:$0xf]
        %v1345 = vld [vmem:[%s1332 + $0x30] sm:$0xf]
        %v1346 = vld [vmem:[%s1332 + $0x34] sm:$0xf]
        %v1347 = vld [vmem:[%s1332 + $0x38] sm:$0xf]
        %v1348 = vld [vmem:[%s1332 + $0x3c] sm:$0xf]
        %s1349 = scalar_lea.vmem %s10, 1
        %v1350 = vld [vmem:[%s1349] sm:$0x1]
        %v1352 = vlaneseq
        %v1353 = vshrl.u32 %v1352, 7
        %v1354 = vsub.s32 0, %v1353
        %v1355 = vrot.slane %v1350, %v1354
        %v1373 = vunpack.c.l.b16 %v1333
        %v1374 = vunpack.c.l.b16 %v1334
        %v1375 = vunpack.c.l.b16 %v1335
        %v1376 = vunpack.c.l.b16 %v1336
        %v1377 = vunpack.c.l.b16 %v1337
        %v1378 = vunpack.c.l.b16 %v1338
        %v1379 = vunpack.c.l.b16 %v1339
        %v1380 = vunpack.c.l.b16 %v1340
        %v1381 = vunpack.c.l.b16 %v1341
        %v1382 = vunpack.c.l.b16 %v1342
        %v1383 = vunpack.c.l.b16 %v1343
        %v1384 = vunpack.c.l.b16 %v1344
        %v1385 = vunpack.c.l.b16 %v1345
        %v1386 = vunpack.c.l.b16 %v1346
        %v1387 = vunpack.c.l.b16 %v1347
        %v1388 = vunpack.c.l.b16 %v1348
        %v1389 = vpack.c.b16 %v1374, %v1373
        %v1390 = vpack.c.b16 %v1376, %v1375
        %v1391 = vpack.c.b16 %v1378, %v1377
        %v1392 = vpack.c.b16 %v1380, %v1379
        %v1393 = vpack.c.b16 %v1382, %v1381
        %v1394 = vpack.c.b16 %v1384, %v1383
        %v1395 = vpack.c.b16 %v1386, %v1385
        %v1396 = vpack.c.b16 %v1388, %v1387
        %1405 = vmatprep.subr.bf16.mxu0 0
        %1406 = vmatpush1.bf16.msra.mxu0 %v1389
        %1407 = vmatprep.subr.bf16.mxu0 0
        %1408 = vmatpush1.bf16.msra.mxu0 %v1390
        %1409 = vmatprep.subr.bf16.mxu0 0
        %1410 = vmatpush1.bf16.msra.mxu0 %v1391
        %1411 = vmatprep.subr.bf16.mxu0 0
        %1412 = vmatpush1.bf16.msra.mxu0 %v1392
        %1413 = vmatprep.subr.bf16.mxu0 0
        %1414 = vmatpush1.bf16.msra.mxu0 %v1393
        %1415 = vmatprep.subr.bf16.mxu0 0
        %1416 = vmatpush1.bf16.msra.mxu0 %v1394
        %1417 = vmatprep.subr.bf16.mxu0 0
        %1418 = vmatpush1.bf16.msra.mxu0 %v1395
        %1419 = vmatprep.subr.bf16.mxu0 0
        %1420 = vmatpush1.bf16.msra.mxu0 %v1396
        %1421 = vmatprep.subr.bf16.mxu0 0
        %1422 = vmatpush1.bf16.msra.mxu0 0
        %1423 = vmatprep.subr.bf16.mxu0 0
        %1424 = vmatpush1.bf16.msra.mxu0 0
        %1425 = vmatprep.subr.bf16.mxu0 0
        %1426 = vmatpush1.bf16.msra.mxu0 0
        %1427 = vmatprep.subr.bf16.mxu0 0
        %1428 = vmatpush1.bf16.msra.mxu0 0
        %1429 = vmatprep.subr.bf16.mxu0 0
        %1430 = vmatpush1.bf16.msra.mxu0 0
        %1431 = vmatprep.subr.bf16.mxu0 0
        %1432 = vmatpush1.bf16.msra.mxu0 0
        %1433 = vmatprep.subr.bf16.mxu0 0
        %1434 = vmatpush1.bf16.msra.mxu0 0
        %1435 = vmatprep.subr.bf16.mxu0 0
        %1436 = vmatpush1.bf16.msra.mxu0 0
        %1437 = vmatprep.mubr.bf16.mxu0 0
        %1438 = vmatmul.mubr.bf16.gmra.mrb[0].mxu0 %v938
        %v1439 = vpop.f32.mrb[0].mxu0
        %v1440 = vadd.f32 %v1355, %v1439
        %v1441 = vpop.f32.mrb[0].mxu0
        %v1442 = vpop.f32.mrb[0].mxu0
        %v1443 = vadd.f32 %v1355, %v1442
        %v1444 = vpop.f32.mrb[0].mxu0
        %1445 = vdwg.mxu0
        %v1446 = vmax.f32 %v1440, 0.0
        %v1447 = vmax.f32 %v1443, 0.0
        %s1448 = scalar_lea.vmem [#allocation13], 64
        %v1449 = vld [vmem:[%s1448] sm:$0xf]
        %v1450 = vld [vmem:[%s1448 + $0x4] sm:$0xf]
        %v1451 = vld [vmem:[%s1448 + $0x8] sm:$0xf]
        %v1452 = vld [vmem:[%s1448 + $0xc] sm:$0xf]
        %v1453 = vld [vmem:[%s1448 + $0x10] sm:$0xf]
        %v1454 = vld [vmem:[%s1448 + $0x14] sm:$0xf]
        %v1455 = vld [vmem:[%s1448 + $0x18] sm:$0xf]
        %v1456 = vld [vmem:[%s1448 + $0x1c] sm:$0xf]
        %v1457 = vld [vmem:[%s1448 + $0x20] sm:$0xf]
        %v1458 = vld [vmem:[%s1448 + $0x24] sm:$0xf]
        %v1459 = vld [vmem:[%s1448 + $0x28] sm:$0xf]
        %v1460 = vld [vmem:[%s1448 + $0x2c] sm:$0xf]
        %v1461 = vld [vmem:[%s1448 + $0x30] sm:$0xf]
        %v1462 = vld [vmem:[%s1448 + $0x34] sm:$0xf]
        %v1463 = vld [vmem:[%s1448 + $0x38] sm:$0xf]
        %v1464 = vld [vmem:[%s1448 + $0x3c] sm:$0xf]
        %v1465 = vpack.c.bf16 %v1447, %v1446
        %v1482 = vunpack.c.l.b16 %v1449
        %v1483 = vunpack.c.l.b16 %v1450
        %v1484 = vunpack.c.l.b16 %v1451
        %v1485 = vunpack.c.l.b16 %v1452
        %v1486 = vunpack.c.l.b16 %v1453
        %v1487 = vunpack.c.l.b16 %v1454
        %v1488 = vunpack.c.l.b16 %v1455
        %v1489 = vunpack.c.l.b16 %v1456
        %v1490 = vunpack.c.l.b16 %v1457
        %v1491 = vunpack.c.l.b16 %v1458
        %v1492 = vunpack.c.l.b16 %v1459
        %v1493 = vunpack.c.l.b16 %v1460
        %v1494 = vunpack.c.l.b16 %v1461
        %v1495 = vunpack.c.l.b16 %v1462
        %v1496 = vunpack.c.l.b16 %v1463
        %v1497 = vunpack.c.l.b16 %v1464
        %v1498 = vpack.c.b16 %v1483, %v1482
        %v1499 = vpack.c.b16 %v1485, %v1484
        %v1500 = vpack.c.b16 %v1487, %v1486
        %v1501 = vpack.c.b16 %v1489, %v1488
        %v1502 = vpack.c.b16 %v1491, %v1490
        %v1503 = vpack.c.b16 %v1493, %v1492
        %v1504 = vpack.c.b16 %v1495, %v1494
        %v1505 = vpack.c.b16 %v1497, %v1496
        %1514 = vmatprep.subr.bf16.mxu0 0
        %1515 = vmatpush1.bf16.msra.mxu0 %v1498
        %1516 = vmatprep.subr.bf16.mxu0 0
        %1517 = vmatpush1.bf16.msra.mxu0 %v1499
        %1518 = vmatprep.subr.bf16.mxu0 0
        %1519 = vmatpush1.bf16.msra.mxu0 %v1500
        %1520 = vmatprep.subr.bf16.mxu0 0
        %1521 = vmatpush1.bf16.msra.mxu0 %v1501
        %1522 = vmatprep.subr.bf16.mxu0 0
        %1523 = vmatpush1.bf16.msra.mxu0 %v1502
        %1524 = vmatprep.subr.bf16.mxu0 0
        %1525 = vmatpush1.bf16.msra.mxu0 %v1503
        %1526 = vmatprep.subr.bf16.mxu0 0
        %1527 = vmatpush1.bf16.msra.mxu0 %v1504
        %1528 = vmatprep.subr.bf16.mxu0 0
        %1529 = vmatpush1.bf16.msra.mxu0 %v1505
        %1530 = vmatprep.subr.bf16.mxu0 0
        %1531 = vmatpush1.bf16.msra.mxu0 0
        %1532 = vmatprep.subr.bf16.mxu0 0
        %1533 = vmatpush1.bf16.msra.mxu0 0
        %1534 = vmatprep.subr.bf16.mxu0 0
        %1535 = vmatpush1.bf16.msra.mxu0 0
        %1536 = vmatprep.subr.bf16.mxu0 0
        %1537 = vmatpush1.bf16.msra.mxu0 0
        %1538 = vmatprep.subr.bf16.mxu0 0
        %1539 = vmatpush1.bf16.msra.mxu0 0
        %1540 = vmatprep.subr.bf16.mxu0 0
        %1541 = vmatpush1.bf16.msra.mxu0 0
        %1542 = vmatprep.subr.bf16.mxu0 0
        %1543 = vmatpush1.bf16.msra.mxu0 0
        %1544 = vmatprep.subr.bf16.mxu0 0
        %1545 = vmatpush1.bf16.msra.mxu0 0
        %1546 = vmatprep.mubr.bf16.mxu0 0
        %1547 = vmatmul.mubr.bf16.gmra.mrb[0].mxu0 %v1465
        %v1548 = vpop.f32.mrb[0].mxu0
        %v1549 = vadd.f32 0.0, %v1548
        %v1550 = vpop.f32.mrb[0].mxu0
        %v1551 = vpop.f32.mrb[0].mxu0
        %v1552 = vadd.f32 0.0, %v1551
        %v1553 = vpop.f32.mrb[0].mxu0
        %1554 = vdwg.mxu0
        %v1571 = vunpack.c.l.b16 %v1315
        %v1572 = vunpack.c.l.b16 %v1316
        %v1573 = vunpack.c.l.b16 %v1317
        %v1574 = vunpack.c.l.b16 %v1318
        %v1575 = vunpack.c.l.b16 %v1319
        %v1576 = vunpack.c.l.b16 %v1320
        %v1577 = vunpack.c.l.b16 %v1321
        %v1578 = vunpack.c.l.b16 %v1322
        %v1579 = vunpack.c.l.b16 %v1323
        %v1580 = vunpack.c.l.b16 %v1324
        %v1581 = vunpack.c.l.b16 %v1325
        %v1582 = vunpack.c.l.b16 %v1326
        %v1583 = vunpack.c.l.b16 %v1327
        %v1584 = vunpack.c.l.b16 %v1328
        %v1585 = vunpack.c.l.b16 %v1329
        %v1586 = vunpack.c.l.b16 %v1330
        %v1587 = vpack.c.b16 %v1572, %v1571
        %v1588 = vpack.c.b16 %v1574, %v1573
        %v1589 = vpack.c.b16 %v1576, %v1575
        %v1590 = vpack.c.b16 %v1578, %v1577
        %v1591 = vpack.c.b16 %v1580, %v1579
        %v1592 = vpack.c.b16 %v1582, %v1581
        %v1593 = vpack.c.b16 %v1584, %v1583
        %v1594 = vpack.c.b16 %v1586, %v1585
        %1603 = vmatprep.subr.bf16.mxu0 0
        %1604 = vmatpush1.bf16.msra.mxu0 %v1587
        %1605 = vmatprep.subr.bf16.mxu0 0
        %1606 = vmatpush1.bf16.msra.mxu0 %v1588
        %1607 = vmatprep.subr.bf16.mxu0 0
        %1608 = vmatpush1.bf16.msra.mxu0 %v1589
        %1609 = vmatprep.subr.bf16.mxu0 0
        %1610 = vmatpush1.bf16.msra.mxu0 %v1590
        %1611 = vmatprep.subr.bf16.mxu0 0
        %1612 = vmatpush1.bf16.msra.mxu0 %v1591
        %1613 = vmatprep.subr.bf16.mxu0 0
        %1614 = vmatpush1.bf16.msra.mxu0 %v1592
        %1615 = vmatprep.subr.bf16.mxu0 0
        %1616 = vmatpush1.bf16.msra.mxu0 %v1593
        %1617 = vmatprep.subr.bf16.mxu0 0
        %1618 = vmatpush1.bf16.msra.mxu0 %v1594
        %1619 = vmatprep.subr.bf16.mxu0 0
        %1620 = vmatpush1.bf16.msra.mxu0 0
        %1621 = vmatprep.subr.bf16.mxu0 0
        %1622 = vmatpush1.bf16.msra.mxu0 0
        %1623 = vmatprep.subr.bf16.mxu0 0
        %1624 = vmatpush1.bf16.msra.mxu0 0
        %1625 = vmatprep.subr.bf16.mxu0 0
        %1626 = vmatpush1.bf16.msra.mxu0 0
        %1627 = vmatprep.subr.bf16.mxu0 0
        %1628 = vmatpush1.bf16.msra.mxu0 0
        %1629 = vmatprep.subr.bf16.mxu0 0
        %1630 = vmatpush1.bf16.msra.mxu0 0
        %1631 = vmatprep.subr.bf16.mxu0 0
        %1632 = vmatpush1.bf16.msra.mxu0 0
        %1633 = vmatprep.subr.bf16.mxu0 0
        %1634 = vmatpush1.bf16.msra.mxu0 0
        %1635 = vmatprep.mubr.bf16.mxu0 0
        %1636 = vmatmul.mubr.bf16.gmra.mrb[0].mxu0 %v1331
        %v1637 = vpop.f32.mrb[0].mxu0
        %v1638 = vadd.f32 %v1549, %v1637
        %v1639 = vpop.f32.mrb[0].mxu0
        %v1640 = vpop.f32.mrb[0].mxu0
        %v1641 = vadd.f32 %v1552, %v1640
        %v1642 = vpop.f32.mrb[0].mxu0
        %1643 = vdwg.mxu0
        %s1644 = scalar_lea.vmem [#allocation11], 128
        %v1645 = vld [vmem:[%s1644] sm:$0xf]
        %v1646 = vld [vmem:[%s1644 + $0x4] sm:$0xf]
        %v1647 = vld [vmem:[%s1644 + $0x8] sm:$0xf]
        %v1648 = vld [vmem:[%s1644 + $0xc] sm:$0xf]
        %v1649 = vld [vmem:[%s1644 + $0x10] sm:$0xf]
        %v1650 = vld [vmem:[%s1644 + $0x14] sm:$0xf]
        %v1651 = vld [vmem:[%s1644 + $0x18] sm:$0xf]
        %v1652 = vld [vmem:[%s1644 + $0x1c] sm:$0xf]
        %v1653 = vld [vmem:[%s1644 + $0x20] sm:$0xf]
        %v1654 = vld [vmem:[%s1644 + $0x24] sm:$0xf]
        %v1655 = vld [vmem:[%s1644 + $0x28] sm:$0xf]
        %v1656 = vld [vmem:[%s1644 + $0x2c] sm:$0xf]
        %v1657 = vld [vmem:[%s1644 + $0x30] sm:$0xf]
        %v1658 = vld [vmem:[%s1644 + $0x34] sm:$0xf]
        %v1659 = vld [vmem:[%s1644 + $0x38] sm:$0xf]
        %v1660 = vld [vmem:[%s1644 + $0x3c] sm:$0xf]
        %s1661 = scalar_lea.vmem %s10, 2
        %v1662 = vld [vmem:[%s1661] sm:$0x1]
        %v1664 = vlaneseq
        %v1665 = vshrl.u32 %v1664, 7
        %v1666 = vsub.s32 0, %v1665
        %v1667 = vrot.slane %v1662, %v1666
        %v1685 = vunpack.c.l.b16 %v1645
        %v1686 = vunpack.c.l.b16 %v1646
        %v1687 = vunpack.c.l.b16 %v1647
        %v1688 = vunpack.c.l.b16 %v1648
        %v1689 = vunpack.c.l.b16 %v1649
        %v1690 = vunpack.c.l.b16 %v1650
        %v1691 = vunpack.c.l.b16 %v1651
        %v1692 = vunpack.c.l.b16 %v1652
        %v1693 = vunpack.c.l.b16 %v1653
        %v1694 = vunpack.c.l.b16 %v1654
        %v1695 = vunpack.c.l.b16 %v1655
        %v1696 = vunpack.c.l.b16 %v1656
        %v1697 = vunpack.c.l.b16 %v1657
        %v1698 = vunpack.c.l.b16 %v1658
        %v1699 = vunpack.c.l.b16 %v1659
        %v1700 = vunpack.c.l.b16 %v1660
        %v1701 = vpack.c.b16 %v1686, %v1685
        %v1702 = vpack.c.b16 %v1688, %v1687
        %v1703 = vpack.c.b16 %v1690, %v1689
        %v1704 = vpack.c.b16 %v1692, %v1691
        %v1705 = vpack.c.b16 %v1694, %v1693
        %v1706 = vpack.c.b16 %v1696, %v1695
        %v1707 = vpack.c.b16 %v1698, %v1697
        %v1708 = vpack.c.b16 %v1700, %v1699
        %1717 = vmatprep.subr.bf16.mxu0 0
        %1718 = vmatpush1.bf16.msra.mxu0 %v1701
        %1719 = vmatprep.subr.bf16.mxu0 0
        %1720 = vmatpush1.bf16.msra.mxu0 %v1702
        %1721 = vmatprep.subr.bf16.mxu0 0
        %1722 = vmatpush1.bf16.msra.mxu0 %v1703
        %1723 = vmatprep.subr.bf16.mxu0 0
        %1724 = vmatpush1.bf16.msra.mxu0 %v1704
        %1725 = vmatprep.subr.bf16.mxu0 0
        %1726 = vmatpush1.bf16.msra.mxu0 %v1705
        %1727 = vmatprep.subr.bf16.mxu0 0
        %1728 = vmatpush1.bf16.msra.mxu0 %v1706
        %1729 = vmatprep.subr.bf16.mxu0 0
        %1730 = vmatpush1.bf16.msra.mxu0 %v1707
        %1731 = vmatprep.subr.bf16.mxu0 0
        %1732 = vmatpush1.bf16.msra.mxu0 %v1708
        %1733 = vmatprep.subr.bf16.mxu0 0
        %1734 = vmatpush1.bf16.msra.mxu0 0
        %1735 = vmatprep.subr.bf16.mxu0 0
        %1736 = vmatpush1.bf16.msra.mxu0 0
        %1737 = vmatprep.subr.bf16.mxu0 0
        %1738 = vmatpush1.bf16.msra.mxu0 0
        %1739 = vmatprep.subr.bf16.mxu0 0
        %1740 = vmatpush1.bf16.msra.mxu0 0
        %1741 = vmatprep.subr.bf16.mxu0 0
        %1742 = vmatpush1.bf16.msra.mxu0 0
        %1743 = vmatprep.subr.bf16.mxu0 0
        %1744 = vmatpush1.bf16.msra.mxu0 0
        %1745 = vmatprep.subr.bf16.mxu0 0
        %1746 = vmatpush1.bf16.msra.mxu0 0
        %1747 = vmatprep.subr.bf16.mxu0 0
        %1748 = vmatpush1.bf16.msra.mxu0 0
        %1749 = vmatprep.mubr.bf16.mxu0 0
        %1750 = vmatmul.mubr.bf16.gmra.mrb[0].mxu0 %v984
        %v1751 = vpop.f32.mrb[0].mxu0
        %v1752 = vadd.f32 %v1667, %v1751
        %v1753 = vpop.f32.mrb[0].mxu0
        %v1754 = vpop.f32.mrb[0].mxu0
        %v1755 = vadd.f32 %v1667, %v1754
        %v1756 = vpop.f32.mrb[0].mxu0
        %1757 = vdwg.mxu0
        %v1758 = vmax.f32 %v1752, 0.0
        %v1759 = vmax.f32 %v1755, 0.0
        %s1760 = scalar_lea.vmem [#allocation13], 128
        %v1761 = vld [vmem:[%s1760] sm:$0xf]
        %v1762 = vld [vmem:[%s1760 + $0x4] sm:$0xf]
        %v1763 = vld [vmem:[%s1760 + $0x8] sm:$0xf]
        %v1764 = vld [vmem:[%s1760 + $0xc] sm:$0xf]
        %v1765 = vld [vmem:[%s1760 + $0x10] sm:$0xf]
        %v1766 = vld [vmem:[%s1760 + $0x14] sm:$0xf]
        %v1767 = vld [vmem:[%s1760 + $0x18] sm:$0xf]
        %v1768 = vld [vmem:[%s1760 + $0x1c] sm:$0xf]
        %v1769 = vld [vmem:[%s1760 + $0x20] sm:$0xf]
        %v1770 = vld [vmem:[%s1760 + $0x24] sm:$0xf]
        %v1771 = vld [vmem:[%s1760 + $0x28] sm:$0xf]
        %v1772 = vld [vmem:[%s1760 + $0x2c] sm:$0xf]
        %v1773 = vld [vmem:[%s1760 + $0x30] sm:$0xf]
        %v1774 = vld [vmem:[%s1760 + $0x34] sm:$0xf]
        %v1775 = vld [vmem:[%s1760 + $0x38] sm:$0xf]
        %v1776 = vld [vmem:[%s1760 + $0x3c] sm:$0xf]
        %v1777 = vpack.c.bf16 %v1759, %v1758
        %v1794 = vunpack.c.l.b16 %v1761
        %v1795 = vunpack.c.l.b16 %v1762
        %v1796 = vunpack.c.l.b16 %v1763
        %v1797 = vunpack.c.l.b16 %v1764
        %v1798 = vunpack.c.l.b16 %v1765
        %v1799 = vunpack.c.l.b16 %v1766
        %v1800 = vunpack.c.l.b16 %v1767
        %v1801 = vunpack.c.l.b16 %v1768
        %v1802 = vunpack.c.l.b16 %v1769
        %v1803 = vunpack.c.l.b16 %v1770
        %v1804 = vunpack.c.l.b16 %v1771
        %v1805 = vunpack.c.l.b16 %v1772
        %v1806 = vunpack.c.l.b16 %v1773
        %v1807 = vunpack.c.l.b16 %v1774
        %v1808 = vunpack.c.l.b16 %v1775
        %v1809 = vunpack.c.l.b16 %v1776
        %v1810 = vpack.c.b16 %v1795, %v1794
        %v1811 = vpack.c.b16 %v1797, %v1796
        %v1812 = vpack.c.b16 %v1799, %v1798
        %v1813 = vpack.c.b16 %v1801, %v1800
        %v1814 = vpack.c.b16 %v1803, %v1802
        %v1815 = vpack.c.b16 %v1805, %v1804
        %v1816 = vpack.c.b16 %v1807, %v1806
        %v1817 = vpack.c.b16 %v1809, %v1808
        %1826 = vmatprep.subr.bf16.mxu0 0
        %1827 = vmatpush1.bf16.msra.mxu0 %v1810
        %1828 = vmatprep.subr.bf16.mxu0 0
        %1829 = vmatpush1.bf16.msra.mxu0 %v1811
        %1830 = vmatprep.subr.bf16.mxu0 0
        %1831 = vmatpush1.bf16.msra.mxu0 %v1812
        %1832 = vmatprep.subr.bf16.mxu0 0
        %1833 = vmatpush1.bf16.msra.mxu0 %v1813
        %1834 = vmatprep.subr.bf16.mxu0 0
        %1835 = vmatpush1.bf16.msra.mxu0 %v1814
        %1836 = vmatprep.subr.bf16.mxu0 0
        %1837 = vmatpush1.bf16.msra.mxu0 %v1815
        %1838 = vmatprep.subr.bf16.mxu0 0
        %1839 = vmatpush1.bf16.msra.mxu0 %v1816
        %1840 = vmatprep.subr.bf16.mxu0 0
        %1841 = vmatpush1.bf16.msra.mxu0 %v1817
        %1842 = vmatprep.subr.bf16.mxu0 0
        %1843 = vmatpush1.bf16.msra.mxu0 0
        %1844 = vmatprep.subr.bf16.mxu0 0
        %1845 = vmatpush1.bf16.msra.mxu0 0
        %1846 = vmatprep.subr.bf16.mxu0 0
        %1847 = vmatpush1.bf16.msra.mxu0 0
        %1848 = vmatprep.subr.bf16.mxu0 0
        %1849 = vmatpush1.bf16.msra.mxu0 0
        %1850 = vmatprep.subr.bf16.mxu0 0
        %1851 = vmatpush1.bf16.msra.mxu0 0
        %1852 = vmatprep.subr.bf16.mxu0 0
        %1853 = vmatpush1.bf16.msra.mxu0 0
        %1854 = vmatprep.subr.bf16.mxu0 0
        %1855 = vmatpush1.bf16.msra.mxu0 0
        %1856 = vmatprep.subr.bf16.mxu0 0
        %1857 = vmatpush1.bf16.msra.mxu0 0
        %1858 = vmatprep.mubr.bf16.mxu0 0
        %1859 = vmatmul.mubr.bf16.gmra.mrb[0].mxu0 %v1777
        %v1860 = vpop.f32.mrb[0].mxu0
        %v1861 = vadd.f32 0.0, %v1860
        %v1862 = vpop.f32.mrb[0].mxu0
        %v1863 = vpop.f32.mrb[0].mxu0
        %v1864 = vadd.f32 0.0, %v1863
        %v1865 = vpop.f32.mrb[0].mxu0
        %1866 = vdwg.mxu0
        %v1867 = vadd.f32 %v1638, %v1861
        %v1868 = vadd.f32 %v1641, %v1864
        %s1869 = scalar_lea.vmem [#allocation11], 192
        %v1870 = vld [vmem:[%s1869] sm:$0xf]
        %v1871 = vld [vmem:[%s1869 + $0x4] sm:$0xf]
        %v1872 = vld [vmem:[%s1869 + $0x8] sm:$0xf]
        %v1873 = vld [vmem:[%s1869 + $0xc] sm:$0xf]
        %v1874 = vld [vmem:[%s1869 + $0x10] sm:$0xf]
        %v1875 = vld [vmem:[%s1869 + $0x14] sm:$0xf]
        %v1876 = vld [vmem:[%s1869 + $0x18] sm:$0xf]
        %v1877 = vld [vmem:[%s1869 + $0x1c] sm:$0xf]
        %v1878 = vld [vmem:[%s1869 + $0x20] sm:$0xf]
        %v1879 = vld [vmem:[%s1869 + $0x24] sm:$0xf]
        %v1880 = vld [vmem:[%s1869 + $0x28] sm:$0xf]
        %v1881 = vld [vmem:[%s1869 + $0x2c] sm:$0xf]
        %v1882 = vld [vmem:[%s1869 + $0x30] sm:$0xf]
        %v1883 = vld [vmem:[%s1869 + $0x34] sm:$0xf]
        %v1884 = vld [vmem:[%s1869 + $0x38] sm:$0xf]
        %v1885 = vld [vmem:[%s1869 + $0x3c] sm:$0xf]
        %s1886 = scalar_lea.vmem %s10, 3
        %v1887 = vld [vmem:[%s1886] sm:$0x1]
        %v1889 = vlaneseq
        %v1890 = vshrl.u32 %v1889, 7
        %v1891 = vsub.s32 0, %v1890
        %v1892 = vrot.slane %v1887, %v1891
        %v1910 = vunpack.c.l.b16 %v1870
        %v1911 = vunpack.c.l.b16 %v1871
        %v1912 = vunpack.c.l.b16 %v1872
        %v1913 = vunpack.c.l.b16 %v1873
        %v1914 = vunpack.c.l.b16 %v1874
        %v1915 = vunpack.c.l.b16 %v1875
        %v1916 = vunpack.c.l.b16 %v1876
        %v1917 = vunpack.c.l.b16 %v1877
        %v1918 = vunpack.c.l.b16 %v1878
        %v1919 = vunpack.c.l.b16 %v1879
        %v1920 = vunpack.c.l.b16 %v1880
        %v1921 = vunpack.c.l.b16 %v1881
        %v1922 = vunpack.c.l.b16 %v1882
        %v1923 = vunpack.c.l.b16 %v1883
        %v1924 = vunpack.c.l.b16 %v1884
        %v1925 = vunpack.c.l.b16 %v1885
        %v1926 = vpack.c.b16 %v1911, %v1910
        %v1927 = vpack.c.b16 %v1913, %v1912
        %v1928 = vpack.c.b16 %v1915, %v1914
        %v1929 = vpack.c.b16 %v1917, %v1916
        %v1930 = vpack.c.b16 %v1919, %v1918
        %v1931 = vpack.c.b16 %v1921, %v1920
        %v1932 = vpack.c.b16 %v1923, %v1922
        %v1933 = vpack.c.b16 %v1925, %v1924
        %1942 = vmatprep.subr.bf16.mxu0 0
        %1943 = vmatpush1.bf16.msra.mxu0 %v1926
        %1944 = vmatprep.subr.bf16.mxu0 0
        %1945 = vmatpush1.bf16.msra.mxu0 %v1927
        %1946 = vmatprep.subr.bf16.mxu0 0
        %1947 = vmatpush1.bf16.msra.mxu0 %v1928
        %1948 = vmatprep.subr.bf16.mxu0 0
        %1949 = vmatpush1.bf16.msra.mxu0 %v1929
        %1950 = vmatprep.subr.bf16.mxu0 0
        %1951 = vmatpush1.bf16.msra.mxu0 %v1930
        %1952 = vmatprep.subr.bf16.mxu0 0
        %1953 = vmatpush1.bf16.msra.mxu0 %v1931
        %1954 = vmatprep.subr.bf16.mxu0 0
        %1955 = vmatpush1.bf16.msra.mxu0 %v1932
        %1956 = vmatprep.subr.bf16.mxu0 0
        %1957 = vmatpush1.bf16.msra.mxu0 %v1933
        %1958 = vmatprep.subr.bf16.mxu0 0
        %1959 = vmatpush1.bf16.msra.mxu0 0
        %1960 = vmatprep.subr.bf16.mxu0 0
        %1961 = vmatpush1.bf16.msra.mxu0 0
        %1962 = vmatprep.subr.bf16.mxu0 0
        %1963 = vmatpush1.bf16.msra.mxu0 0
        %1964 = vmatprep.subr.bf16.mxu0 0
        %1965 = vmatpush1.bf16.msra.mxu0 0
        %1966 = vmatprep.subr.bf16.mxu0 0
        %1967 = vmatpush1.bf16.msra.mxu0 0
        %1968 = vmatprep.subr.bf16.mxu0 0
        %1969 = vmatpush1.bf16.msra.mxu0 0
        %1970 = vmatprep.subr.bf16.mxu0 0
        %1971 = vmatpush1.bf16.msra.mxu0 0
        %1972 = vmatprep.subr.bf16.mxu0 0
        %1973 = vmatpush1.bf16.msra.mxu0 0
        %1974 = vmatprep.mubr.bf16.mxu0 0
        %1975 = vmatmul.mubr.bf16.gmra.mrb[0].mxu0 %v1030
        %v1976 = vpop.f32.mrb[0].mxu0
        %v1977 = vadd.f32 %v1892, %v1976
        %v1978 = vpop.f32.mrb[0].mxu0
        %v1979 = vpop.f32.mrb[0].mxu0
        %v1980 = vadd.f32 %v1892, %v1979
        %v1981 = vpop.f32.mrb[0].mxu0
        %1982 = vdwg.mxu0
        %v1983 = vmax.f32 %v1977, 0.0
        %v1984 = vmax.f32 %v1980, 0.0
        %s1985 = scalar_lea.vmem [#allocation13], 192
        %v1986 = vld [vmem:[%s1985] sm:$0xf]
        %v1987 = vld [vmem:[%s1985 + $0x4] sm:$0xf]
        %v1988 = vld [vmem:[%s1985 + $0x8] sm:$0xf]
        %v1989 = vld [vmem:[%s1985 + $0xc] sm:$0xf]
        %v1990 = vld [vmem:[%s1985 + $0x10] sm:$0xf]
        %v1991 = vld [vmem:[%s1985 + $0x14] sm:$0xf]
        %v1992 = vld [vmem:[%s1985 + $0x18] sm:$0xf]
        %v1993 = vld [vmem:[%s1985 + $0x1c] sm:$0xf]
        %v1994 = vld [vmem:[%s1985 + $0x20] sm:$0xf]
        %v1995 = vld [vmem:[%s1985 + $0x24] sm:$0xf]
        %v1996 = vld [vmem:[%s1985 + $0x28] sm:$0xf]
        %v1997 = vld [vmem:[%s1985 + $0x2c] sm:$0xf]
        %v1998 = vld [vmem:[%s1985 + $0x30] sm:$0xf]
        %v1999 = vld [vmem:[%s1985 + $0x34] sm:$0xf]
        %v2000 = vld [vmem:[%s1985 + $0x38] sm:$0xf]
        %v2001 = vld [vmem:[%s1985 + $0x3c] sm:$0xf]
        %v2002 = vpack.c.bf16 %v1984, %v1983
        %v2019 = vunpack.c.l.b16 %v1986
        %v2020 = vunpack.c.l.b16 %v1987
        %v2021 = vunpack.c.l.b16 %v1988
        %v2022 = vunpack.c.l.b16 %v1989
        %v2023 = vunpack.c.l.b16 %v1990
        %v2024 = vunpack.c.l.b16 %v1991
        %v2025 = vunpack.c.l.b16 %v1992
        %v2026 = vunpack.c.l.b16 %v1993
        %v2027 = vunpack.c.l.b16 %v1994
        %v2028 = vunpack.c.l.b16 %v1995
        %v2029 = vunpack.c.l.b16 %v1996
        %v2030 = vunpack.c.l.b16 %v1997
        %v2031 = vunpack.c.l.b16 %v1998
        %v2032 = vunpack.c.l.b16 %v1999
        %v2033 = vunpack.c.l.b16 %v2000
        %v2034 = vunpack.c.l.b16 %v2001
        %v2035 = vpack.c.b16 %v2020, %v2019
        %v2036 = vpack.c.b16 %v2022, %v2021
        %v2037 = vpack.c.b16 %v2024, %v2023
        %v2038 = vpack.c.b16 %v2026, %v2025
        %v2039 = vpack.c.b16 %v2028, %v2027
        %v2040 = vpack.c.b16 %v2030, %v2029
        %v2041 = vpack.c.b16 %v2032, %v2031
        %v2042 = vpack.c.b16 %v2034, %v2033
        %2051 = vmatprep.subr.bf16.mxu0 0
        %2052 = vmatpush1.bf16.msra.mxu0 %v2035
        %2053 = vmatprep.subr.bf16.mxu0 0
        %2054 = vmatpush1.bf16.msra.mxu0 %v2036
        %2055 = vmatprep.subr.bf16.mxu0 0
        %2056 = vmatpush1.bf16.msra.mxu0 %v2037
        %2057 = vmatprep.subr.bf16.mxu0 0
        %2058 = vmatpush1.bf16.msra.mxu0 %v2038
        %2059 = vmatprep.subr.bf16.mxu0 0
        %2060 = vmatpush1.bf16.msra.mxu0 %v2039
        %2061 = vmatprep.subr.bf16.mxu0 0
        %2062 = vmatpush1.bf16.msra.mxu0 %v2040
        %2063 = vmatprep.subr.bf16.mxu0 0
        %2064 = vmatpush1.bf16.msra.mxu0 %v2041
        %2065 = vmatprep.subr.bf16.mxu0 0
        %2066 = vmatpush1.bf16.msra.mxu0 %v2042
        %2067 = vmatprep.subr.bf16.mxu0 0
        %2068 = vmatpush1.bf16.msra.mxu0 0
        %2069 = vmatprep.subr.bf16.mxu0 0
        %2070 = vmatpush1.bf16.msra.mxu0 0
        %2071 = vmatprep.subr.bf16.mxu0 0
        %2072 = vmatpush1.bf16.msra.mxu0 0
        %2073 = vmatprep.subr.bf16.mxu0 0
        %2074 = vmatpush1.bf16.msra.mxu0 0
        %2075 = vmatprep.subr.bf16.mxu0 0
        %2076 = vmatpush1.bf16.msra.mxu0 0
        %2077 = vmatprep.subr.bf16.mxu0 0
        %2078 = vmatpush1.bf16.msra.mxu0 0
        %2079 = vmatprep.subr.bf16.mxu0 0
        %2080 = vmatpush1.bf16.msra.mxu0 0
        %2081 = vmatprep.subr.bf16.mxu0 0
        %2082 = vmatpush1.bf16.msra.mxu0 0
        %2083 = vmatprep.mubr.bf16.mxu0 0
        %2084 = vmatmul.mubr.bf16.gmra.mrb[0].mxu0 %v2002
        %v2085 = vpop.f32.mrb[0].mxu0
        %v2086 = vadd.f32 0.0, %v2085
        %v2087 = vpop.f32.mrb[0].mxu0
        %v2088 = vpop.f32.mrb[0].mxu0
        %v2089 = vadd.f32 0.0, %v2088
        %v2090 = vpop.f32.mrb[0].mxu0
        %2091 = vdwg.mxu0
        %v2092 = vadd.f32 %v1867, %v2086
        %v2093 = vadd.f32 %v1868, %v2089
        %s2094 = scalar_lea.vmem [#allocation11], 256
        %v2095 = vld [vmem:[%s2094] sm:$0xf]
        %v2096 = vld [vmem:[%s2094 + $0x4] sm:$0xf]
        %v2097 = vld [vmem:[%s2094 + $0x8] sm:$0xf]
        %v2098 = vld [vmem:[%s2094 + $0xc] sm:$0xf]
        %v2099 = vld [vmem:[%s2094 + $0x10] sm:$0xf]
        %v2100 = vld [vmem:[%s2094 + $0x14] sm:$0xf]
        %v2101 = vld [vmem:[%s2094 + $0x18] sm:$0xf]
        %v2102 = vld [vmem:[%s2094 + $0x1c] sm:$0xf]
        %v2103 = vld [vmem:[%s2094 + $0x20] sm:$0xf]
        %v2104 = vld [vmem:[%s2094 + $0x24] sm:$0xf]
        %v2105 = vld [vmem:[%s2094 + $0x28] sm:$0xf]
        %v2106 = vld [vmem:[%s2094 + $0x2c] sm:$0xf]
        %v2107 = vld [vmem:[%s2094 + $0x30] sm:$0xf]
        %v2108 = vld [vmem:[%s2094 + $0x34] sm:$0xf]
        %v2109 = vld [vmem:[%s2094 + $0x38] sm:$0xf]
        %v2110 = vld [vmem:[%s2094 + $0x3c] sm:$0xf]
        %s2111 = scalar_lea.vmem %s10, 4
        %v2112 = vld [vmem:[%s2111] sm:$0x1]
        %v2114 = vlaneseq
        %v2115 = vshrl.u32 %v2114, 7
        %v2116 = vsub.s32 0, %v2115
        %v2117 = vrot.slane %v2112, %v2116
        %v2135 = vunpack.c.l.b16 %v2095
        %v2136 = vunpack.c.l.b16 %v2096
        %v2137 = vunpack.c.l.b16 %v2097
        %v2138 = vunpack.c.l.b16 %v2098
        %v2139 = vunpack.c.l.b16 %v2099
        %v2140 = vunpack.c.l.b16 %v2100
        %v2141 = vunpack.c.l.b16 %v2101
        %v2142 = vunpack.c.l.b16 %v2102
        %v2143 = vunpack.c.l.b16 %v2103
        %v2144 = vunpack.c.l.b16 %v2104
        %v2145 = vunpack.c.l.b16 %v2105
        %v2146 = vunpack.c.l.b16 %v2106
        %v2147 = vunpack.c.l.b16 %v2107
        %v2148 = vunpack.c.l.b16 %v2108
        %v2149 = vunpack.c.l.b16 %v2109
        %v2150 = vunpack.c.l.b16 %v2110
        %v2151 = vpack.c.b16 %v2136, %v2135
        %v2152 = vpack.c.b16 %v2138, %v2137
        %v2153 = vpack.c.b16 %v2140, %v2139
        %v2154 = vpack.c.b16 %v2142, %v2141
        %v2155 = vpack.c.b16 %v2144, %v2143
        %v2156 = vpack.c.b16 %v2146, %v2145
        %v2157 = vpack.c.b16 %v2148, %v2147
        %v2158 = vpack.c.b16 %v2150, %v2149
        %2167 = vmatprep.subr.bf16.mxu0 0
        %2168 = vmatpush1.bf16.msra.mxu0 %v2151
        %2169 = vmatprep.subr.bf16.mxu0 0
        %2170 = vmatpush1.bf16.msra.mxu0 %v2152
        %2171 = vmatprep.subr.bf16.mxu0 0
        %2172 = vmatpush1.bf16.msra.mxu0 %v2153
        %2173 = vmatprep.subr.bf16.mxu0 0
        %2174 = vmatpush1.bf16.msra.mxu0 %v2154
        %2175 = vmatprep.subr.bf16.mxu0 0
        %2176 = vmatpush1.bf16.msra.mxu0 %v2155
        %2177 = vmatprep.subr.bf16.mxu0 0
        %2178 = vmatpush1.bf16.msra.mxu0 %v2156
        %2179 = vmatprep.subr.bf16.mxu0 0
        %2180 = vmatpush1.bf16.msra.mxu0 %v2157
        %2181 = vmatprep.subr.bf16.mxu0 0
        %2182 = vmatpush1.bf16.msra.mxu0 %v2158
        %2183 = vmatprep.subr.bf16.mxu0 0
        %2184 = vmatpush1.bf16.msra.mxu0 0
        %2185 = vmatprep.subr.bf16.mxu0 0
        %2186 = vmatpush1.bf16.msra.mxu0 0
        %2187 = vmatprep.subr.bf16.mxu0 0
        %2188 = vmatpush1.bf16.msra.mxu0 0
        %2189 = vmatprep.subr.bf16.mxu0 0
        %2190 = vmatpush1.bf16.msra.mxu0 0
        %2191 = vmatprep.subr.bf16.mxu0 0
        %2192 = vmatpush1.bf16.msra.mxu0 0
        %2193 = vmatprep.subr.bf16.mxu0 0
        %2194 = vmatpush1.bf16.msra.mxu0 0
        %2195 = vmatprep.subr.bf16.mxu0 0
        %2196 = vmatpush1.bf16.msra.mxu0 0
        %2197 = vmatprep.subr.bf16.mxu0 0
        %2198 = vmatpush1.bf16.msra.mxu0 0
        %2199 = vmatprep.mubr.bf16.mxu0 0
        %2200 = vmatmul.mubr.bf16.gmra.mrb[0].mxu0 %v1092
        %v2201 = vpop.f32.mrb[0].mxu0
        %v2202 = vadd.f32 %v2117, %v2201
        %v2203 = vpop.f32.mrb[0].mxu0
        %v2204 = vpop.f32.mrb[0].mxu0
        %v2205 = vadd.f32 %v2117, %v2204
        %v2206 = vpop.f32.mrb[0].mxu0
        %2207 = vdwg.mxu0
        %v2208 = vmax.f32 %v2202, 0.0
        %v2209 = vmax.f32 %v2205, 0.0
        %s2210 = scalar_lea.vmem [#allocation13], 256
        %v2211 = vld [vmem:[%s2210] sm:$0xf]
        %v2212 = vld [vmem:[%s2210 + $0x4] sm:$0xf]
        %v2213 = vld [vmem:[%s2210 + $0x8] sm:$0xf]
        %v2214 = vld [vmem:[%s2210 + $0xc] sm:$0xf]
        %v2215 = vld [vmem:[%s2210 + $0x10] sm:$0xf]
        %v2216 = vld [vmem:[%s2210 + $0x14] sm:$0xf]
        %v2217 = vld [vmem:[%s2210 + $0x18] sm:$0xf]
        %v2218 = vld [vmem:[%s2210 + $0x1c] sm:$0xf]
        %v2219 = vld [vmem:[%s2210 + $0x20] sm:$0xf]
        %v2220 = vld [vmem:[%s2210 + $0x24] sm:$0xf]
        %v2221 = vld [vmem:[%s2210 + $0x28] sm:$0xf]
        %v2222 = vld [vmem:[%s2210 + $0x2c] sm:$0xf]
        %v2223 = vld [vmem:[%s2210 + $0x30] sm:$0xf]
        %v2224 = vld [vmem:[%s2210 + $0x34] sm:$0xf]
        %v2225 = vld [vmem:[%s2210 + $0x38] sm:$0xf]
        %v2226 = vld [vmem:[%s2210 + $0x3c] sm:$0xf]
        %v2227 = vpack.c.bf16 %v2209, %v2208
        %v2244 = vunpack.c.l.b16 %v2211
        %v2245 = vunpack.c.l.b16 %v2212
        %v2246 = vunpack.c.l.b16 %v2213
        %v2247 = vunpack.c.l.b16 %v2214
        %v2248 = vunpack.c.l.b16 %v2215
        %v2249 = vunpack.c.l.b16 %v2216
        %v2250 = vunpack.c.l.b16 %v2217
        %v2251 = vunpack.c.l.b16 %v2218
        %v2252 = vunpack.c.l.b16 %v2219
        %v2253 = vunpack.c.l.b16 %v2220
        %v2254 = vunpack.c.l.b16 %v2221
        %v2255 = vunpack.c.l.b16 %v2222
        %v2256 = vunpack.c.l.b16 %v2223
        %v2257 = vunpack.c.l.b16 %v2224
        %v2258 = vunpack.c.l.b16 %v2225
        %v2259 = vunpack.c.l.b16 %v2226
        %v2260 = vpack.c.b16 %v2245, %v2244
        %v2261 = vpack.c.b16 %v2247, %v2246
        %v2262 = vpack.c.b16 %v2249, %v2248
        %v2263 = vpack.c.b16 %v2251, %v2250
        %v2264 = vpack.c.b16 %v2253, %v2252
        %v2265 = vpack.c.b16 %v2255, %v2254
        %v2266 = vpack.c.b16 %v2257, %v2256
        %v2267 = vpack.c.b16 %v2259, %v2258
        %2276 = vmatprep.subr.bf16.mxu0 0
        %2277 = vmatpush1.bf16.msra.mxu0 %v2260
        %2278 = vmatprep.subr.bf16.mxu0 0
        %2279 = vmatpush1.bf16.msra.mxu0 %v2261
        %2280 = vmatprep.subr.bf16.mxu0 0
        %2281 = vmatpush1.bf16.msra.mxu0 %v2262
        %2282 = vmatprep.subr.bf16.mxu0 0
        %2283 = vmatpush1.bf16.msra.mxu0 %v2263
        %2284 = vmatprep.subr.bf16.mxu0 0
        %2285 = vmatpush1.bf16.msra.mxu0 %v2264
        %2286 = vmatprep.subr.bf16.mxu0 0
        %2287 = vmatpush1.bf16.msra.mxu0 %v2265
        %2288 = vmatprep.subr.bf16.mxu0 0
        %2289 = vmatpush1.bf16.msra.mxu0 %v2266
        %2290 = vmatprep.subr.bf16.mxu0 0
        %2291 = vmatpush1.bf16.msra.mxu0 %v2267
        %2292 = vmatprep.subr.bf16.mxu0 0
        %2293 = vmatpush1.bf16.msra.mxu0 0
        %2294 = vmatprep.subr.bf16.mxu0 0
        %2295 = vmatpush1.bf16.msra.mxu0 0
        %2296 = vmatprep.subr.bf16.mxu0 0
        %2297 = vmatpush1.bf16.msra.mxu0 0
        %2298 = vmatprep.subr.bf16.mxu0 0
        %2299 = vmatpush1.bf16.msra.mxu0 0
        %2300 = vmatprep.subr.bf16.mxu0 0
        %2301 = vmatpush1.bf16.msra.mxu0 0
        %2302 = vmatprep.subr.bf16.mxu0 0
        %2303 = vmatpush1.bf16.msra.mxu0 0
        %2304 = vmatprep.subr.bf16.mxu0 0
        %2305 = vmatpush1.bf16.msra.mxu0 0
        %2306 = vmatprep.subr.bf16.mxu0 0
        %2307 = vmatpush1.bf16.msra.mxu0 0
        %2308 = vmatprep.mubr.bf16.mxu0 0
        %2309 = vmatmul.mubr.bf16.gmra.mrb[0].mxu0 %v2227
        %v2310 = vpop.f32.mrb[0].mxu0
        %v2311 = vadd.f32 0.0, %v2310
        %v2312 = vpop.f32.mrb[0].mxu0
        %v2313 = vpop.f32.mrb[0].mxu0
        %v2314 = vadd.f32 0.0, %v2313
        %v2315 = vpop.f32.mrb[0].mxu0
        %2316 = vdwg.mxu0
        %v2317 = vadd.f32 %v2092, %v2311
        %v2318 = vadd.f32 %v2093, %v2314
        %v2319 = vld [vmem:[%s12] sm:$0x1]
        %v2321 = vlaneseq
        %v2322 = vshrl.u32 %v2321, 7
        %v2323 = vsub.s32 0, %v2322
        %v2324 = vrot.slane %v2319, %v2323
        %v2326 = vadd.f32 %v2317, %v2324
        %v2327 = vadd.f32 %v2318, %v2324
        %v2328 = vsub.f32 0.0, %v2326
        %v2329 = vsub.f32 0.0, %v2327
        %v2330 = vmul.f32 %v2328, 1.442695
        %v2331 = vpow.pop %v2330
        %v2332 = vmul.f32 %v2329, 1.442695
        %v2333 = vpow.pop %v2332
        %v2334 = vadd.f32 %v2331, 1.0
        %v2335 = vadd.f32 %v2333, 1.0
        %v2336 = vrcp.pop %v2334
        %v2337 = vmul.f32 1.0, %v2336
        %v2338 = vrcp.pop %v2335
        %v2339 = vmul.f32 1.0, %v2338
        %2340 = vst [vmem:[%s576] sm:$0xff] %v1198
        %2341 = vst [vmem:[%s576 + $0x8] sm:$0xff] %v1200
        %2342 = vst [vmem:[%s583] sm:$0xff] %v2337
        %2343 = vst [vmem:[%s583 + $0x8] sm:$0xff] %v2339
        %s2344 = sand.u32 %s324, 1
        %s2345 = scalar_lea.sflag [#allocation4], %s2344
        %s2346 = sand.u32 %s324, 1
        %s2347 = smul.addr %s2346, 16
        %s2348 = scalar_lea.vmem [#allocation14], %s2347
        %s2349 = sand.u32 %s350, 1
        %s2350 = scalar_lea.sflag [#allocation16], %s2349
        %s2351 = sand.u32 %s350, 1
        %s2352 = smul.addr %s2351, 16
        %s2353 = scalar_lea.vmem [#allocation15], %s2352
        // Predicated region
        $region101: #{tpu_custom_call.1} parent=71 // pred_check
          %p2354 = pneg %p334
        $region102: #{tpu_custom_call.1} parent=71 // pred_check_branch
          %2356 = sbr.rel (%p2354) target = $region104
        $region103: #{tpu_custom_call.1} parent=71 // pred_region
          %s2357 = smul.u32 2, %s38
          %s2359 = ssub.s32 256, 256
          %2360 = vsyncadd %s2345, %s2359
          %s2361 = smul.addr %s2357, 128
          %s2362 = scalar_lea.hbm %s13, %s2361
          %s2363 = sshll.u32 %s2348, 4
          %s2364 = int_to_ptr.vmem [resolvable:$true] %s2363
          %2369 = dma.vmem_to_hbm [thread:$0]  %s2364, 256, %s2362, %s2345, 128, 128, 8
        $region104: #{tpu_custom_call.1} parent=71 // pred_fallthru
          _
        // Predicated region
        $region105: #{tpu_custom_call.1} parent=71 // pred_check
          %p2370 = pneg %p360
        $region106: #{tpu_custom_call.1} parent=71 // pred_check_branch
          %2372 = sbr.rel (%p2370) target = $region108
        $region107: #{tpu_custom_call.1} parent=71 // pred_region
          %s2373 = smul.u32 2, %s38
          %s2375 = ssub.s32 256, 256
          %2376 = vsyncadd %s2350, %s2375
          %s2377 = smul.addr %s2373, 128
          %s2378 = scalar_lea.hbm %s14, %s2377
          %s2379 = sshll.u32 %s2353, 4
          %s2380 = int_to_ptr.vmem [resolvable:$true] %s2379
          %2385 = dma.vmem_to_hbm [thread:$0]  %s2380, 256, %s2378, %s2350, 128, 128, 8
        $region108: #{tpu_custom_call.1} parent=71 // pred_fallthru
          _
      $region72: #{tpu_custom_call.1} parent=5 // pred_fallthru
        _
      %p2386 = scmp.le.s32.totalorder 2, %s33
      // Predicated region
      $region109: #{tpu_custom_call.1} parent=5 // pred_check
        %p2387 = pneg %p2386
      $region110: #{tpu_custom_call.1} parent=5 // pred_check_branch
        %2389 = sbr.rel (%p2387) target = $region112
      $region111: #{tpu_custom_call.1} parent=5 // pred_region
        %s2390 = ssub.s32 %s33, 2
        // Predicated region
        $region113: #{tpu_custom_call.1} parent=111 // pred_check
          %p2391 = pneg %p340
        $region114: #{tpu_custom_call.1} parent=111 // pred_check_branch
          %2393 = sbr.rel (%p2391) target = $region116
        $region115: #{tpu_custom_call.1} parent=111 // pred_region
          %s2394 = sand.u32 %s325, 1
          %s2395 = scalar_lea.sflag [#allocation4], %s2394
          %s2396 = sand.u32 %s325, 1
          %s2397 = smul.addr %s2396, 16
          %s2398 = scalar_lea.vmem [#allocation14], %s2397
          %2399 = dma.done %s2395, 256
        $region116: #{tpu_custom_call.1} parent=111 // pred_fallthru
          _
        // Predicated region
        $region117: #{tpu_custom_call.1} parent=111 // pred_check
          %p2400 = pneg %p366
        $region118: #{tpu_custom_call.1} parent=111 // pred_check_branch
          %2402 = sbr.rel (%p2400) target = $region120
        $region119: #{tpu_custom_call.1} parent=111 // pred_region
          %s2403 = sand.u32 %s351, 1
          %s2404 = scalar_lea.sflag [#allocation16], %s2403
          %s2405 = sand.u32 %s351, 1
          %s2406 = smul.addr %s2405, 16
          %s2407 = scalar_lea.vmem [#allocation15], %s2406
          %2408 = dma.done %s2404, 256
        $region120: #{tpu_custom_call.1} parent=111 // pred_fallthru
          _
      $region112: #{tpu_custom_call.1} parent=5 // pred_fallthru
        _
    $region6: #{tpu_custom_call.1} parent=1 // loop_footer
      %s37 = sadd.s32 1, %s33
    $region7: #{tpu_custom_call.1} parent=1 // loop_footer_branch
      %32 = sbr.rel target = $region3
    $region8: #{tpu_custom_call.1} parent=1 // loop_exit
      _
    %2409 = vsyncpa [#allocation3], 1
    %s2410 = scalar_lea.sflag [#allocation3], 1
    %2411 = vsyncpa %s2410, 1
    %2412 = vsyncpa [#allocation6], 1
    %2413 = vsyncpa [#allocation9], 1
    %2414 = vsyncpa [#allocation12], 1
    %2415 = vsyncpa [#allocation4], 1
    %s2416 = scalar_lea.sflag [#allocation4], 1
    %2417 = vsyncpa %s2416, 1
    %2418 = vsyncpa [#allocation16], 1
    %s2419 = scalar_lea.sflag [#allocation16], 1
    %2420 = vsyncpa %s2419, 1

</llo_original>
